<compile_context>
chip_gen: v5e
topology: v5e:2x2
jax: 0.10.0
libtpu: 0.0.40
codegen_flags: <defaults>
</compile_context>

<pallas_src>
import jax
import jax.numpy as jnp
from jax import lax
from jax.experimental import pallas as pl
from jax.experimental.pallas import tpu as pltpu


# ----------------------------- coef kernel ------------------------------------
# sigmoid(fc2(relu(fc1(avgpool(laplace3x3(x)))))) for all batches in one shot.
# By linearity, valid-3x3-conv followed by a global mean over the output is
#   pooled[b, o] = (1/N) * sum_{ki,kj} sum_i W[o,i,ki,kj] * S_{ki,kj}[b, i]
# where S_{ki,kj} is the per-channel sum of x over the interior window
# [ki, ki+H-2) x [kj, kj+W-2).  We build the 9 window sums from 3 column-window
# partial sums (static slices only; no iota masks).

def _coef_kernel(x_ref, wlapt_ref, blap_ref, wfc1t_ref, wfc2t_ref, coef_ref):
    bb, c, h, w = x_ref.shape
    ho, wo = h - 2, w - 2
    xs = x_ref[...]                                           # (B, C, H, W)
    acc = jnp.zeros((bb, c), jnp.float32)
    for kj in range(3):
        cw = jnp.sum(xs[:, :, :, kj:kj + wo], axis=3)         # (B, C, H)
        for ki in range(3):
            s = jnp.sum(cw[:, :, ki:ki + ho], axis=2)         # (B, C) = S_{ki,kj}
            acc = acc + jnp.dot(s, wlapt_ref[ki * 3 + kj],
                                preferred_element_type=jnp.float32)
    pooled = acc * (1.0 / float(ho * wo)) + blap_ref[...]     # (B, C)
    h1 = jnp.maximum(jnp.dot(pooled, wfc1t_ref[...],
                             preferred_element_type=jnp.float32), 0.0)
    logit = jnp.dot(h1, wfc2t_ref[...],
                    preferred_element_type=jnp.float32)       # (B, 1)
    coef_ref[...] = 1.0 / (1.0 + jnp.exp(-logit))


# --------------------------- spectral kernel -----------------------------------
# Per (batch, HW-tile) block: high-pass filter + conv1 (1x1) + ReLU + conv2 (1x1)
# on the stacked [real; imag] spectrum.  Two full (2C,2C)@(2C,T) MXU matmuls.

def _spectral_kernel(coef_ref, y_ref, hf_ref, w1_ref, b1_ref, w2_ref, b2_ref,
                     out_ref):
    coef = coef_ref[pl.program_id(0)]                         # scalar from SMEM
    filt = 1.0 - coef * hf_ref[...]                           # (1, T)
    yf = y_ref[0] * filt                                      # (2C, T)
    hid = jnp.maximum(
        jnp.dot(w1_ref[...], yf, preferred_element_type=jnp.float32)
        + b1_ref[...], 0.0)                                   # (2C, T)
    out_ref[0] = (jnp.dot(w2_ref[...], hid, preferred_element_type=jnp.float32)
                  + b2_ref[...])                              # (2C, T)


# ------------------------------ JAX glue ---------------------------------------

def make_gaussian(h, w, sigma):
    yv = jnp.arange(h, dtype=jnp.float32)[:, None]
    xv = jnp.arange(w, dtype=jnp.float32)[None, :]
    g = jnp.exp(-((yv - (h // 2)) ** 2 + (xv - (w // 2)) ** 2) / (2.0 * sigma ** 2))
    return g                                                  # (h, w)


def _vmem_plan():
    """Per-generation VMEM limit and tile budget (v7x 64 MiB vs v5e/v6e 128 MiB)."""
    phys = 64 << 20                                           # conservative default (v7x)
    try:
        info = pltpu.get_tpu_info()
        phys = int(getattr(info, "vmem_capacity_bytes", phys))
    except Exception:
        pass
    vmem_limit = max(32 << 20, min(int(phys * 0.75), 100 << 20))
    tile_budget = int(vmem_limit * 0.75)
    return vmem_limit, tile_budget


def _pick_hw_tile(hw, c, budget_bytes):
    """Largest lane-dense (multiple-of-128) divisor of hw that fits the budget."""
    c2 = 2 * c
    # per lane of T: in/out blocks double-buffered (4*c2*4 B) + hf (2*4 B)
    #                + ~3 working (2C,T) f32 temporaries in the body.
    bytes_per_lane = 4 * (4 * c2 + 2 + 3 * c2)
    cap = (budget_bytes // bytes_per_lane) // 128 * 128
    cap = max(128, min(cap, 32768))
    if hw <= cap:
        return hw
    if hw % 128 != 0:
        # TODO(synk): pad HW to a multiple of 128 instead of full-extent fallback.
        return hw
    for t in range(cap, 127, -128):
        if hw % t == 0:
            return t
    return hw


def lfm_resize_adaptive(x, params, sigma):
    b, c, h, w = x.shape
    x = x.astype(jnp.float32)
    hw = h * w
    c2 = 2 * c

    # --- weight re-layouts (tiny, done once) ---
    wlapt = jnp.transpose(params["w_lap"], (2, 3, 1, 0)).reshape(9, c, c)  # [k, in, out]
    blap_row = params["b_lap"].reshape(1, c)
    wfc1t = params["w_fc1"].T                                  # (c, c)
    wfc2t = params["w_fc2"].T                                  # (c, 1)
    w1 = params["w_conv1"].reshape(c2, c2)
    b1 = params["b_conv1"].reshape(c2, 1)
    w2 = params["w_conv2"].reshape(c2, c2)
    b2 = params["b_conv2"].reshape(c2, 1)

    # --- per-batch coef: tiny standalone Pallas kernel (grid=(1,), batched) ---
    coef = pl.pallas_call(
        _coef_kernel,
        out_shape=jax.ShapeDtypeStruct((b, 1), jnp.float32),
        grid_spec=pltpu.PrefetchScalarGridSpec(
            num_scalar_prefetch=0,
            grid=(1,),
            in_specs=[
                pl.BlockSpec((b, c, h, w), lambda i: (0, 0, 0, 0)),
                pl.BlockSpec((9, c, c), lambda i: (0, 0, 0)),
                pl.BlockSpec((1, c), lambda i: (0, 0)),
                pl.BlockSpec((c, c), lambda i: (0, 0)),
                pl.BlockSpec((c, 1), lambda i: (0, 0)),
            ],
            out_specs=pl.BlockSpec((b, 1), lambda i: (0, 0)),
        ),
        compiler_params=pltpu.CompilerParams(
            dimension_semantics=("arbitrary",)),
    )(x, wlapt, blap_row, wfc1t, wfc2t)
    coef_flat = coef.reshape(b)                                # (B,) f32 -> SMEM table

    # --- spectrum (FFT has no Pallas TPU primitive) ---
    yfft = jnp.fft.fft2(x)                                     # complex64 (b, c, h, w)
    ystack = jnp.concatenate(
        [yfft.real.astype(jnp.float32), yfft.imag.astype(jnp.float32)],
        axis=1).reshape(b, c2, hw)                             # (B, 2C, HW) [real; imag]

    hf = make_gaussian(h, w, sigma)                            # (h, w)
    hf_flat = hf.reshape(1, hw)

    vmem_limit, tile_budget = _vmem_plan()
    t = _pick_hw_tile(hw, c, tile_budget)
    grid = (b, hw // t)

    out = pl.pallas_call(
        _spectral_kernel,
        out_shape=jax.ShapeDtypeStruct((b, c2, hw), jnp.float32),
        grid_spec=pltpu.PrefetchScalarGridSpec(
            num_scalar_prefetch=0,
            grid=grid,
            in_specs=[
                # per-batch coef table, whole array resident in SMEM
                pl.BlockSpec(memory_space=pltpu.MemorySpace.SMEM),
                pl.BlockSpec((1, c2, t), lambda i, j: (i, 0, j)),   # stacked spectrum
                pl.BlockSpec((1, t), lambda i, j: (0, j)),          # gaussian high-pass
                pl.BlockSpec((c2, c2), lambda i, j: (0, 0)),        # conv1 W
                pl.BlockSpec((c2, 1), lambda i, j: (0, 0)),         # conv1 b
                pl.BlockSpec((c2, c2), lambda i, j: (0, 0)),        # conv2 W
                pl.BlockSpec((c2, 1), lambda i, j: (0, 0)),         # conv2 b
            ],
            out_specs=pl.BlockSpec((1, c2, t), lambda i, j: (i, 0, j)),
        ),
        compiler_params=pltpu.CompilerParams(
            dimension_semantics=("parallel", "parallel"),
            vmem_limit_bytes=vmem_limit,
        ),
    )(coef_flat, ystack, hf_flat, w1, b1, w2, b2)

    out = out.reshape(b, c2, h, w)
    # torch .float() on a complex tensor keeps the real part only.
    y = jnp.fft.ifft2(out[:, :c] + 1j * out[:, c:], s=(h, w)).real.astype(jnp.float32)
    high_filter = hf[None, None]                               # (1, 1, h, w)
    return x + y, high_filter


# -------------------------- pure-JAX reference ----------------------------------

def reference(x, params, sigma):
    b, c, h, w = x.shape
    x = x.astype(jnp.float32)
    conv = lax.conv_general_dilated(
        x, params["w_lap"], window_strides=(1, 1), padding="VALID",
        dimension_numbers=("NCHW", "OIHW", "NCHW")) + params["b_lap"][None, :, None, None]
    pooled = jnp.mean(conv, axis=(2, 3))
    hfc = jnp.maximum(pooled @ params["w_fc1"].T, 0.0)
    coef = jax.nn.sigmoid(hfc @ params["w_fc2"].T).reshape(b, 1, 1, 1)
    yfft = jnp.fft.fft2(x)
    hf = make_gaussian(h, w, sigma)[None, None]
    yfft = yfft * (1.0 - coef * hf)
    yf = jnp.concatenate([yfft.real, yfft.imag], axis=1)
    c2 = 2 * c
    y1 = jnp.maximum(
        jnp.einsum("oc,bchw->bohw", params["w_conv1"].reshape(c2, c2), yf)
        + params["b_conv1"][None, :, None, None], 0.0)
    y2 = (jnp.einsum("oc,bchw->bohw", params["w_conv2"].reshape(c2, c2), y1)
          + params["b_conv2"][None, :, None, None])
    yr, yi = y2[:, :c], y2[:, c:]
    y = jnp.fft.ifft2(yr + 1j * yi, s=(h, w)).real
    return x + y, hf


def init_params(key, c):
    c2 = 2 * c
    ks = jax.random.split(key, 8)
    return {
        "w_conv1": 0.1 * jax.random.normal(ks[0], (c2, c2, 1, 1), jnp.float32),
        "b_conv1": 0.1 * jax.random.normal(ks[1], (c2,), jnp.float32),
        "w_conv2": 0.1 * jax.random.normal(ks[2], (c2, c2, 1, 1), jnp.float32),
        "b_conv2": 0.1 * jax.random.normal(ks[3], (c2,), jnp.float32),
        "w_lap":   0.1 * jax.random.normal(ks[4], (c, c, 3, 3), jnp.float32),
        "b_lap":   0.1 * jax.random.normal(ks[5], (c,), jnp.float32),
        "w_fc1":   0.1 * jax.random.normal(ks[6], (c, c), jnp.float32),
        "w_fc2":   0.1 * jax.random.normal(ks[7], (1, c), jnp.float32),
    }


if __name__ == "__main__":
    B, C, H, W = 2, 4, 16, 16
    SIGMA = 7
    key = jax.random.PRNGKey(0)
    kx, kp = jax.random.split(key)
    x = jax.random.normal(kx, (B, C, H, W), jnp.float32)
    params = init_params(kp, C)

    fwd = jax.jit(lfm_resize_adaptive, static_argnames=("sigma",))
    out, hf = fwd(x, params, sigma=SIGMA)
    out = jax.block_until_ready(out)
    hf = jax.block_until_ready(hf)

    ref_out, ref_hf = reference(x, params, SIGMA)
    assert out.shape == (B, C, H, W)
    assert hf.shape == (1, 1, H, W)
    assert float(jnp.max(jnp.abs(out - ref_out))) < 2e-2
    assert float(jnp.max(jnp.abs(hf - ref_hf))) < 1e-6
    print("KERNEL_OK")
</pallas_src>

<mosaic_0001>
module attributes {stable_mosaic.version = 11 : i64} {
  func.func @_coef_kernel(%arg0: i32, %arg1: memref<2x4x16x16xf32, #tpu.memory_space<vmem>>, %arg2: memref<9x4x4xf32, #tpu.memory_space<vmem>>, %arg3: memref<1x4xf32, #tpu.memory_space<vmem>>, %arg4: memref<4x4xf32, #tpu.memory_space<vmem>>, %arg5: memref<4x1xf32, #tpu.memory_space<vmem>>, %arg6: memref<2x1xf32, #tpu.memory_space<vmem>>) attributes {dimension_semantics = [#tpu.dimension_semantics<arbitrary>], iteration_bounds = array<i64: 1>, scalar_prefetch = 0 : i64, scratch_operands = 0 : i64, tpu.core_type = #tpu.core_type<tc>, window_params = [{pipeline_mode = #tpu.pipeline_mode<synchronous>, transform_indices = @transform_0, window_bounds = array<i64: 2, 4, 16, 16>}, {pipeline_mode = #tpu.pipeline_mode<synchronous>, transform_indices = @transform_1, window_bounds = array<i64: 9, 4, 4>}, {pipeline_mode = #tpu.pipeline_mode<synchronous>, transform_indices = @transform_2, window_bounds = array<i64: 1, 4>}, {pipeline_mode = #tpu.pipeline_mode<synchronous>, transform_indices = @transform_3, window_bounds = array<i64: 4, 4>}, {pipeline_mode = #tpu.pipeline_mode<synchronous>, transform_indices = @transform_4, window_bounds = array<i64: 4, 1>}, {pipeline_mode = #tpu.pipeline_mode<synchronous>, transform_indices = @transform_5, window_bounds = array<i64: 2, 1>}]} {
    %c0 = arith.constant 0 : index
    %c0_0 = arith.constant 0 : index
    %c0_1 = arith.constant 0 : index
    %c0_2 = arith.constant 0 : index
    %0 = vector.load %arg1[%c0, %c0_0, %c0_1, %c0_2] : memref<2x4x16x16xf32, #tpu.memory_space<vmem>>, vector<2x4x16x16xf32>
    %cst = arith.constant 0.000000e+00 : f32
    %1 = vector.broadcast %cst : f32 to vector<2x4xf32>
    %2 = vector.extract_strided_slice %0 {offsets = [0, 0, 0, 0], sizes = [2, 4, 16, 14], strides = [1, 1, 1, 1]} : vector<2x4x16x16xf32> to vector<2x4x16x14xf32>
    %cst_3 = arith.constant dense<0.000000e+00> : vector<2x4x16xf32>
    %3 = vector.multi_reduction <add>, %2, %cst_3 [3] : vector<2x4x16x14xf32> to vector<2x4x16xf32>
    %4 = vector.extract_strided_slice %3 {offsets = [0, 0, 0], sizes = [2, 4, 14], strides = [1, 1, 1]} : vector<2x4x16xf32> to vector<2x4x14xf32>
    %cst_4 = arith.constant dense<0.000000e+00> : vector<2x4xf32>
    %5 = vector.multi_reduction <add>, %4, %cst_4 [2] : vector<2x4x14xf32> to vector<2x4xf32>
    %c0_5 = arith.constant 0 : index
    %c0_6 = arith.constant 0 : index
    %c0_7 = arith.constant 0 : index
    %6 = vector.load %arg2[%c0_5, %c0_6, %c0_7] : memref<9x4x4xf32, #tpu.memory_space<vmem>>, vector<1x4x4xf32>
    %7 = vector.shape_cast %6 : vector<1x4x4xf32> to vector<4x4xf32>
    %cst_8 = arith.constant dense<0.000000e+00> : vector<2x4xf32>
    %8 = tpu.matmul %5, %7, %cst_8 {dimension_numbers = #tpu.dot_dimension_numbers<[1], [0], [0], [1], [0, 0, 1, 1], [], []>} : vector<2x4xf32>, vector<4x4xf32>, vector<2x4xf32> -> vector<2x4xf32>
    %9 = arith.addf %1, %8 : vector<2x4xf32>
    %10 = vector.extract_strided_slice %3 {offsets = [0, 0, 1], sizes = [2, 4, 14], strides = [1, 1, 1]} : vector<2x4x16xf32> to vector<2x4x14xf32>
    %cst_9 = arith.constant dense<0.000000e+00> : vector<2x4xf32>
    %11 = vector.multi_reduction <add>, %10, %cst_9 [2] : vector<2x4x14xf32> to vector<2x4xf32>
    %c3 = arith.constant 3 : index
    %c0_10 = arith.constant 0 : index
    %c0_11 = arith.constant 0 : index
    %12 = vector.load %arg2[%c3, %c0_10, %c0_11] : memref<9x4x4xf32, #tpu.memory_space<vmem>>, vector<1x4x4xf32>
    %13 = vector.shape_cast %12 : vector<1x4x4xf32> to vector<4x4xf32>
    %cst_12 = arith.constant dense<0.000000e+00> : vector<2x4xf32>
    %14 = tpu.matmul %11, %13, %cst_12 {dimension_numbers = #tpu.dot_dimension_numbers<[1], [0], [0], [1], [0, 0, 1, 1], [], []>} : vector<2x4xf32>, vector<4x4xf32>, vector<2x4xf32> -> vector<2x4xf32>
    %15 = arith.addf %9, %14 : vector<2x4xf32>
    %16 = vector.extract_strided_slice %3 {offsets = [0, 0, 2], sizes = [2, 4, 14], strides = [1, 1, 1]} : vector<2x4x16xf32> to vector<2x4x14xf32>
    %cst_13 = arith.constant dense<0.000000e+00> : vector<2x4xf32>
    %17 = vector.multi_reduction <add>, %16, %cst_13 [2] : vector<2x4x14xf32> to vector<2x4xf32>
    %c6 = arith.constant 6 : index
    %c0_14 = arith.constant 0 : index
    %c0_15 = arith.constant 0 : index
    %18 = vector.load %arg2[%c6, %c0_14, %c0_15] : memref<9x4x4xf32, #tpu.memory_space<vmem>>, vector<1x4x4xf32>
    %19 = vector.shape_cast %18 : vector<1x4x4xf32> to vector<4x4xf32>
    %cst_16 = arith.constant dense<0.000000e+00> : vector<2x4xf32>
    %20 = tpu.matmul %17, %19, %cst_16 {dimension_numbers = #tpu.dot_dimension_numbers<[1], [0], [0], [1], [0, 0, 1, 1], [], []>} : vector<2x4xf32>, vector<4x4xf32>, vector<2x4xf32> -> vector<2x4xf32>
    %21 = arith.addf %15, %20 : vector<2x4xf32>
    %22 = vector.extract_strided_slice %0 {offsets = [0, 0, 0, 1], sizes = [2, 4, 16, 14], strides = [1, 1, 1, 1]} : vector<2x4x16x16xf32> to vector<2x4x16x14xf32>
    %cst_17 = arith.constant dense<0.000000e+00> : vector<2x4x16xf32>
    %23 = vector.multi_reduction <add>, %22, %cst_17 [3] : vector<2x4x16x14xf32> to vector<2x4x16xf32>
    %24 = vector.extract_strided_slice %23 {offsets = [0, 0, 0], sizes = [2, 4, 14], strides = [1, 1, 1]} : vector<2x4x16xf32> to vector<2x4x14xf32>
    %cst_18 = arith.constant dense<0.000000e+00> : vector<2x4xf32>
    %25 = vector.multi_reduction <add>, %24, %cst_18 [2] : vector<2x4x14xf32> to vector<2x4xf32>
    %c1 = arith.constant 1 : index
    %c0_19 = arith.constant 0 : index
    %c0_20 = arith.constant 0 : index
    %26 = vector.load %arg2[%c1, %c0_19, %c0_20] : memref<9x4x4xf32, #tpu.memory_space<vmem>>, vector<1x4x4xf32>
    %27 = vector.shape_cast %26 : vector<1x4x4xf32> to vector<4x4xf32>
    %cst_21 = arith.constant dense<0.000000e+00> : vector<2x4xf32>
    %28 = tpu.matmul %25, %27, %cst_21 {dimension_numbers = #tpu.dot_dimension_numbers<[1], [0], [0], [1], [0, 0, 1, 1], [], []>} : vector<2x4xf32>, vector<4x4xf32>, vector<2x4xf32> -> vector<2x4xf32>
    %29 = arith.addf %21, %28 : vector<2x4xf32>
    %30 = vector.extract_strided_slice %23 {offsets = [0, 0, 1], sizes = [2, 4, 14], strides = [1, 1, 1]} : vector<2x4x16xf32> to vector<2x4x14xf32>
    %cst_22 = arith.constant dense<0.000000e+00> : vector<2x4xf32>
    %31 = vector.multi_reduction <add>, %30, %cst_22 [2] : vector<2x4x14xf32> to vector<2x4xf32>
    %c4 = arith.constant 4 : index
    %c0_23 = arith.constant 0 : index
    %c0_24 = arith.constant 0 : index
    %32 = vector.load %arg2[%c4, %c0_23, %c0_24] : memref<9x4x4xf32, #tpu.memory_space<vmem>>, vector<1x4x4xf32>
    %33 = vector.shape_cast %32 : vector<1x4x4xf32> to vector<4x4xf32>
    %cst_25 = arith.constant dense<0.000000e+00> : vector<2x4xf32>
    %34 = tpu.matmul %31, %33, %cst_25 {dimension_numbers = #tpu.dot_dimension_numbers<[1], [0], [0], [1], [0, 0, 1, 1], [], []>} : vector<2x4xf32>, vector<4x4xf32>, vector<2x4xf32> -> vector<2x4xf32>
    %35 = arith.addf %29, %34 : vector<2x4xf32>
    %36 = vector.extract_strided_slice %23 {offsets = [0, 0, 2], sizes = [2, 4, 14], strides = [1, 1, 1]} : vector<2x4x16xf32> to vector<2x4x14xf32>
    %cst_26 = arith.constant dense<0.000000e+00> : vector<2x4xf32>
    %37 = vector.multi_reduction <add>, %36, %cst_26 [2] : vector<2x4x14xf32> to vector<2x4xf32>
    %c7 = arith.constant 7 : index
    %c0_27 = arith.constant 0 : index
    %c0_28 = arith.constant 0 : index
    %38 = vector.load %arg2[%c7, %c0_27, %c0_28] : memref<9x4x4xf32, #tpu.memory_space<vmem>>, vector<1x4x4xf32>
    %39 = vector.shape_cast %38 : vector<1x4x4xf32> to vector<4x4xf32>
    %cst_29 = arith.constant dense<0.000000e+00> : vector<2x4xf32>
    %40 = tpu.matmul %37, %39, %cst_29 {dimension_numbers = #tpu.dot_dimension_numbers<[1], [0], [0], [1], [0, 0, 1, 1], [], []>} : vector<2x4xf32>, vector<4x4xf32>, vector<2x4xf32> -> vector<2x4xf32>
    %41 = arith.addf %35, %40 : vector<2x4xf32>
    %42 = vector.extract_strided_slice %0 {offsets = [0, 0, 0, 2], sizes = [2, 4, 16, 14], strides = [1, 1, 1, 1]} : vector<2x4x16x16xf32> to vector<2x4x16x14xf32>
    %cst_30 = arith.constant dense<0.000000e+00> : vector<2x4x16xf32>
    %43 = vector.multi_reduction <add>, %42, %cst_30 [3] : vector<2x4x16x14xf32> to vector<2x4x16xf32>
    %44 = vector.extract_strided_slice %43 {offsets = [0, 0, 0], sizes = [2, 4, 14], strides = [1, 1, 1]} : vector<2x4x16xf32> to vector<2x4x14xf32>
    %cst_31 = arith.constant dense<0.000000e+00> : vector<2x4xf32>
    %45 = vector.multi_reduction <add>, %44, %cst_31 [2] : vector<2x4x14xf32> to vector<2x4xf32>
    %c2 = arith.constant 2 : index
    %c0_32 = arith.constant 0 : index
    %c0_33 = arith.constant 0 : index
    %46 = vector.load %arg2[%c2, %c0_32, %c0_33] : memref<9x4x4xf32, #tpu.memory_space<vmem>>, vector<1x4x4xf32>
    %47 = vector.shape_cast %46 : vector<1x4x4xf32> to vector<4x4xf32>
    %cst_34 = arith.constant dense<0.000000e+00> : vector<2x4xf32>
    %48 = tpu.matmul %45, %47, %cst_34 {dimension_numbers = #tpu.dot_dimension_numbers<[1], [0], [0], [1], [0, 0, 1, 1], [], []>} : vector<2x4xf32>, vector<4x4xf32>, vector<2x4xf32> -> vector<2x4xf32>
    %49 = arith.addf %41, %48 : vector<2x4xf32>
    %50 = vector.extract_strided_slice %43 {offsets = [0, 0, 1], sizes = [2, 4, 14], strides = [1, 1, 1]} : vector<2x4x16xf32> to vector<2x4x14xf32>
    %cst_35 = arith.constant dense<0.000000e+00> : vector<2x4xf32>
    %51 = vector.multi_reduction <add>, %50, %cst_35 [2] : vector<2x4x14xf32> to vector<2x4xf32>
    %c5 = arith.constant 5 : index
    %c0_36 = arith.constant 0 : index
    %c0_37 = arith.constant 0 : index
    %52 = vector.load %arg2[%c5, %c0_36, %c0_37] : memref<9x4x4xf32, #tpu.memory_space<vmem>>, vector<1x4x4xf32>
    %53 = vector.shape_cast %52 : vector<1x4x4xf32> to vector<4x4xf32>
    %cst_38 = arith.constant dense<0.000000e+00> : vector<2x4xf32>
    %54 = tpu.matmul %51, %53, %cst_38 {dimension_numbers = #tpu.dot_dimension_numbers<[1], [0], [0], [1], [0, 0, 1, 1], [], []>} : vector<2x4xf32>, vector<4x4xf32>, vector<2x4xf32> -> vector<2x4xf32>
    %55 = arith.addf %49, %54 : vector<2x4xf32>
    %56 = vector.extract_strided_slice %43 {offsets = [0, 0, 2], sizes = [2, 4, 14], strides = [1, 1, 1]} : vector<2x4x16xf32> to vector<2x4x14xf32>
    %cst_39 = arith.constant dense<0.000000e+00> : vector<2x4xf32>
    %57 = vector.multi_reduction <add>, %56, %cst_39 [2] : vector<2x4x14xf32> to vector<2x4xf32>
    %c8 = arith.constant 8 : index
    %c0_40 = arith.constant 0 : index
    %c0_41 = arith.constant 0 : index
    %58 = vector.load %arg2[%c8, %c0_40, %c0_41] : memref<9x4x4xf32, #tpu.memory_space<vmem>>, vector<1x4x4xf32>
    %59 = vector.shape_cast %58 : vector<1x4x4xf32> to vector<4x4xf32>
    %cst_42 = arith.constant dense<0.000000e+00> : vector<2x4xf32>
    %60 = tpu.matmul %57, %59, %cst_42 {dimension_numbers = #tpu.dot_dimension_numbers<[1], [0], [0], [1], [0, 0, 1, 1], [], []>} : vector<2x4xf32>, vector<4x4xf32>, vector<2x4xf32> -> vector<2x4xf32>
    %61 = arith.addf %55, %60 : vector<2x4xf32>
    %cst_43 = arith.constant 0.00510204071 : f32
    %62 = vector.broadcast %cst_43 : f32 to vector<2x4xf32>
    %63 = arith.mulf %61, %62 : vector<2x4xf32>
    %c0_44 = arith.constant 0 : index
    %c0_45 = arith.constant 0 : index
    %64 = vector.load %arg3[%c0_44, %c0_45] : memref<1x4xf32, #tpu.memory_space<vmem>>, vector<1x4xf32>
    %65 = vector.broadcast %64 : vector<1x4xf32> to vector<2x4xf32>
    %66 = arith.addf %63, %65 : vector<2x4xf32>
    %c0_46 = arith.constant 0 : index
    %c0_47 = arith.constant 0 : index
    %67 = vector.load %arg4[%c0_46, %c0_47] : memref<4x4xf32, #tpu.memory_space<vmem>>, vector<4x4xf32>
    %cst_48 = arith.constant dense<0.000000e+00> : vector<2x4xf32>
    %68 = tpu.matmul %66, %67, %cst_48 {dimension_numbers = #tpu.dot_dimension_numbers<[1], [0], [0], [1], [0, 0, 1, 1], [], []>} : vector<2x4xf32>, vector<4x4xf32>, vector<2x4xf32> -> vector<2x4xf32>
    %cst_49 = arith.constant 0.000000e+00 : f32
    %69 = vector.broadcast %cst_49 : f32 to vector<2x4xf32>
    %70 = arith.maximumf %68, %69 : vector<2x4xf32>
    %c0_50 = arith.constant 0 : index
    %c0_51 = arith.constant 0 : index
    %71 = vector.load %arg5[%c0_50, %c0_51] : memref<4x1xf32, #tpu.memory_space<vmem>>, vector<4x1xf32>
    %cst_52 = arith.constant dense<0.000000e+00> : vector<2x1xf32>
    %72 = tpu.matmul %70, %71, %cst_52 {dimension_numbers = #tpu.dot_dimension_numbers<[1], [0], [0], [1], [0, 0, 1, 1], [], []>} : vector<2x4xf32>, vector<4x1xf32>, vector<2x1xf32> -> vector<2x1xf32>
    %cst_53 = arith.constant 0.000000e+00 : f32
    %73 = vector.broadcast %cst_53 : f32 to vector<2x1xf32>
    %74 = arith.subf %73, %72 : vector<2x1xf32>
    %75 = math.exp %74 : vector<2x1xf32>
    %cst_54 = arith.constant 1.000000e+00 : f32
    %76 = vector.broadcast %cst_54 : f32 to vector<2x1xf32>
    %77 = arith.addf %76, %75 : vector<2x1xf32>
    %cst_55 = arith.constant 1.000000e+00 : f32
    %78 = vector.broadcast %cst_55 : f32 to vector<2x1xf32>
    %79 = arith.divf %78, %77 : vector<2x1xf32>
    %c0_56 = arith.constant 0 : index
    %c0_57 = arith.constant 0 : index
    %80 = vector.load %arg6[%c0_56, %c0_57] : memref<2x1xf32, #tpu.memory_space<vmem>>, vector<2x1xf32>
    tpu.vector_store %arg6[%c0_56, %c0_57], %79 {strides = array<i32>} : memref<2x1xf32, #tpu.memory_space<vmem>>, vector<2x1xf32>,
    return
  }
  func.func @transform_0(%arg0: i32) -> (i32, i32, i32, i32) {
    %c0_i32 = arith.constant 0 : i32
    %c0_i32_0 = arith.constant 0 : i32
    %c0_i32_1 = arith.constant 0 : i32
    %c0_i32_2 = arith.constant 0 : i32
    %c0_i32_3 = arith.constant 0 : i32
    return %c0_i32, %c0_i32_0, %c0_i32_1, %c0_i32_2 : i32, i32, i32, i32
  }
  func.func @transform_1(%arg0: i32) -> (i32, i32, i32) {
    %c0_i32 = arith.constant 0 : i32
    %c0_i32_0 = arith.constant 0 : i32
    %c0_i32_1 = arith.constant 0 : i32
    %c0_i32_2 = arith.constant 0 : i32
    return %c0_i32, %c0_i32_0, %c0_i32_1 : i32, i32, i32
  }
  func.func @transform_2(%arg0: i32) -> (i32, i32) {
    %c0_i32 = arith.constant 0 : i32
    %c0_i32_0 = arith.constant 0 : i32
    %c0_i32_1 = arith.constant 0 : i32
    return %c0_i32, %c0_i32_0 : i32, i32
  }
  func.func @transform_3(%arg0: i32) -> (i32, i32) {
    %c0_i32 = arith.constant 0 : i32
    %c0_i32_0 = arith.constant 0 : i32
    %c0_i32_1 = arith.constant 0 : i32
    return %c0_i32, %c0_i32_0 : i32, i32
  }
  func.func @transform_4(%arg0: i32) -> (i32, i32) {
    %c0_i32 = arith.constant 0 : i32
    %c0_i32_0 = arith.constant 0 : i32
    %c0_i32_1 = arith.constant 0 : i32
    return %c0_i32, %c0_i32_0 : i32, i32
  }
  func.func @transform_5(%arg0: i32) -> (i32, i32) {
    %c0_i32 = arith.constant 0 : i32
    %c0_i32_0 = arith.constant 0 : i32
    %c0_i32_1 = arith.constant 0 : i32
    return %c0_i32, %c0_i32_0 : i32, i32
  }
}

module attributes {stable_mosaic.version = 11 : i64} {
  func.func @_spectral_kernel(%arg0: i32, %arg1: i32, %arg2: memref<2xf32, #tpu.memory_space<smem>>, %arg3: memref<1x8x256xf32, #tpu.memory_space<vmem>>, %arg4: memref<1x256xf32, #tpu.memory_space<vmem>>, %arg5: memref<8x8xf32, #tpu.memory_space<vmem>>, %arg6: memref<8x1xf32, #tpu.memory_space<vmem>>, %arg7: memref<8x8xf32, #tpu.memory_space<vmem>>, %arg8: memref<8x1xf32, #tpu.memory_space<vmem>>, %arg9: memref<1x8x256xf32, #tpu.memory_space<vmem>>) attributes {dimension_semantics = [#tpu.dimension_semantics<parallel>, #tpu.dimension_semantics<parallel>], iteration_bounds = array<i64: 2, 1>, scalar_prefetch = 0 : i64, scratch_operands = 0 : i64, tpu.core_type = #tpu.core_type<tc>, window_params = [{transform_indices = @transform_0, window_bounds = array<i64: 2>}, {transform_indices = @transform_1, window_bounds = array<i64: 1, 8, 256>}, {transform_indices = @transform_2, window_bounds = array<i64: 1, 256>}, {pipeline_mode = #tpu.pipeline_mode<synchronous>, transform_indices = @transform_3, window_bounds = array<i64: 8, 8>}, {pipeline_mode = #tpu.pipeline_mode<synchronous>, transform_indices = @transform_4, window_bounds = array<i64: 8, 1>}, {pipeline_mode = #tpu.pipeline_mode<synchronous>, transform_indices = @transform_5, window_bounds = array<i64: 8, 8>}, {pipeline_mode = #tpu.pipeline_mode<synchronous>, transform_indices = @transform_6, window_bounds = array<i64: 8, 1>}, {transform_indices = @transform_7, window_bounds = array<i64: 1, 8, 256>}]} {
    %0 = arith.index_cast %arg0 : i32 to index
    %1 = memref.load %arg2[%0] : memref<2xf32, #tpu.memory_space<smem>>
    %c0 = arith.constant 0 : index
    %c0_0 = arith.constant 0 : index
    %2 = vector.load %arg4[%c0, %c0_0] : memref<1x256xf32, #tpu.memory_space<vmem>>, vector<1x256xf32>
    %3 = vector.broadcast %1 : f32 to vector<1x256xf32>
    %4 = arith.mulf %3, %2 : vector<1x256xf32>
    %cst = arith.constant 1.000000e+00 : f32
    %5 = vector.broadcast %cst : f32 to vector<1x256xf32>
    %6 = arith.subf %5, %4 : vector<1x256xf32>
    %c0_1 = arith.constant 0 : index
    %c0_2 = arith.constant 0 : index
    %c0_3 = arith.constant 0 : index
    %7 = vector.load %arg3[%c0_1, %c0_2, %c0_3] : memref<1x8x256xf32, #tpu.memory_space<vmem>>, vector<1x8x256xf32>
    %8 = vector.shape_cast %7 : vector<1x8x256xf32> to vector<8x256xf32>
    %9 = vector.broadcast %6 : vector<1x256xf32> to vector<8x256xf32>
    %10 = arith.mulf %8, %9 : vector<8x256xf32>
    %c0_4 = arith.constant 0 : index
    %c0_5 = arith.constant 0 : index
    %11 = vector.load %arg5[%c0_4, %c0_5] : memref<8x8xf32, #tpu.memory_space<vmem>>, vector<8x8xf32>
    %cst_6 = arith.constant dense<0.000000e+00> : vector<8x256xf32>
    %12 = tpu.matmul %11, %10, %cst_6 {dimension_numbers = #tpu.dot_dimension_numbers<[1], [0], [0], [1], [0, 0, 1, 1], [], []>} : vector<8x8xf32>, vector<8x256xf32>, vector<8x256xf32> -> vector<8x256xf32>
    %c0_7 = arith.constant 0 : index
    %c0_8 = arith.constant 0 : index
    %13 = vector.load %arg6[%c0_7, %c0_8] : memref<8x1xf32, #tpu.memory_space<vmem>>, vector<8x1xf32>
    %14 = vector.broadcast %13 : vector<8x1xf32> to vector<8x256xf32>
    %15 = arith.addf %12, %14 : vector<8x256xf32>
    %cst_9 = arith.constant 0.000000e+00 : f32
    %16 = vector.broadcast %cst_9 : f32 to vector<8x256xf32>
    %17 = arith.maximumf %15, %16 : vector<8x256xf32>
    %c0_10 = arith.constant 0 : index
    %c0_11 = arith.constant 0 : index
    %18 = vector.load %arg7[%c0_10, %c0_11] : memref<8x8xf32, #tpu.memory_space<vmem>>, vector<8x8xf32>
    %cst_12 = arith.constant dense<0.000000e+00> : vector<8x256xf32>
    %19 = tpu.matmul %18, %17, %cst_12 {dimension_numbers = #tpu.dot_dimension_numbers<[1], [0], [0], [1], [0, 0, 1, 1], [], []>} : vector<8x8xf32>, vector<8x256xf32>, vector<8x256xf32> -> vector<8x256xf32>
    %c0_13 = arith.constant 0 : index
    %c0_14 = arith.constant 0 : index
    %20 = vector.load %arg8[%c0_13, %c0_14] : memref<8x1xf32, #tpu.memory_space<vmem>>, vector<8x1xf32>
    %21 = vector.broadcast %20 : vector<8x1xf32> to vector<8x256xf32>
    %22 = arith.addf %19, %21 : vector<8x256xf32>
    %c0_15 = arith.constant 0 : index
    %c0_16 = arith.constant 0 : index
    %c0_17 = arith.constant 0 : index
    %23 = vector.load %arg9[%c0_15, %c0_16, %c0_17] : memref<1x8x256xf32, #tpu.memory_space<vmem>>, vector<1x8x256xf32>
    %24 = vector.shape_cast %23 : vector<1x8x256xf32> to vector<8x256xf32>
    %25 = vector.shape_cast %22 : vector<8x256xf32> to vector<1x8x256xf32>
    tpu.vector_store %arg9[%c0_15, %c0_16, %c0_17], %25 {strides = array<i32>} : memref<1x8x256xf32, #tpu.memory_space<vmem>>, vector<1x8x256xf32>,
    return
  }
  func.func @transform_0(%arg0: i32, %arg1: i32) -> i32 {
    %c0_i32 = arith.constant 0 : i32
    %c0_i32_0 = arith.constant 0 : i32
    return %c0_i32 : i32
  }
  func.func @transform_1(%arg0: i32, %arg1: i32) -> (i32, i32, i32) {
    %c0_i32 = arith.constant 0 : i32
    %c0_i32_0 = arith.constant 0 : i32
    return %arg0, %c0_i32, %arg1 : i32, i32, i32
  }
  func.func @transform_2(%arg0: i32, %arg1: i32) -> (i32, i32) {
    %c0_i32 = arith.constant 0 : i32
    %c0_i32_0 = arith.constant 0 : i32
    return %c0_i32, %arg1 : i32, i32
  }
  func.func @transform_3(%arg0: i32, %arg1: i32) -> (i32, i32) {
    %c0_i32 = arith.constant 0 : i32
    %c0_i32_0 = arith.constant 0 : i32
    %c0_i32_1 = arith.constant 0 : i32
    return %c0_i32, %c0_i32_0 : i32, i32
  }
  func.func @transform_4(%arg0: i32, %arg1: i32) -> (i32, i32) {
    %c0_i32 = arith.constant 0 : i32
    %c0_i32_0 = arith.constant 0 : i32
    %c0_i32_1 = arith.constant 0 : i32
    return %c0_i32, %c0_i32_0 : i32, i32
  }
  func.func @transform_5(%arg0: i32, %arg1: i32) -> (i32, i32) {
    %c0_i32 = arith.constant 0 : i32
    %c0_i32_0 = arith.constant 0 : i32
    %c0_i32_1 = arith.constant 0 : i32
    return %c0_i32, %c0_i32_0 : i32, i32
  }
  func.func @transform_6(%arg0: i32, %arg1: i32) -> (i32, i32) {
    %c0_i32 = arith.constant 0 : i32
    %c0_i32_0 = arith.constant 0 : i32
    %c0_i32_1 = arith.constant 0 : i32
    return %c0_i32, %c0_i32_0 : i32, i32
  }
  func.func @transform_7(%arg0: i32, %arg1: i32) -> (i32, i32, i32) {
    %c0_i32 = arith.constant 0 : i32
    %c0_i32_0 = arith.constant 0 : i32
    return %arg0, %c0_i32, %arg1 : i32, i32, i32
  }
}

</mosaic_0001>

<llo_original>
// kernel: lfm_resize_adaptive.3
$region0: #{lfm_resize_adaptive.3}
  #allocation0 [shape = 'u32[]', space=smem, size = 0x4, offset = 0x4, fixed_abs, tag = 'smem constant byte address 0x4 - core index']
  #allocation1 [shape = 'u32[72,128]{1,0:T(1,128)}', space=vmem, size = 0x9000, scoped, tag = 'internal scratch']
  %s0 = inlined_call_operand.vmem [shape: f32[2], index: 0, kind: input, shape index: {}]
  %s1 = inlined_call_operand.vmem [shape: f32[2,8,256], index: 1, kind: input, shape index: {}]
  %s2 = inlined_call_operand.vmem [shape: f32[1,256], index: 2, kind: input, shape index: {}]
  %s3 = inlined_call_operand.vmem [shape: f32[8,8], index: 3, kind: input, shape index: {}]
  %s4 = inlined_call_operand.vmem [shape: f32[8,1], index: 4, kind: input, shape index: {}]
  %s5 = inlined_call_operand.vmem [shape: f32[8,8], index: 5, kind: input, shape index: {}]
  %s6 = inlined_call_operand.vmem [shape: f32[8,1], index: 6, kind: input, shape index: {}]
  %s7 = inlined_call_operand.vmem [shape: f32[2,8,256], index: 7, kind: output, shape index: {}]
  %s8 = sld [smem:[#allocation0]]
  $region65: #{lfm_resize_adaptive.3} parent=0
    _
  %s10 = ssub.s32 1, %s8
  %s11 = scalar_select 0, %s10, %s8
  $region1: #{lfm_resize_adaptive.3} parent=0
    #allocation2 [shape = 'u8[512]{0}', space=smem, size = 0x200, scoped, tag = 'input window, operand 0, single buffered']
    #allocation3 [shape = 's32[2]{0}', space=sflag, size = 0x8, scoped, tag = 'scoped memory for lfm_resize_adaptive.3']
    %12 = vsyncpa [#allocation3], 0
    loop: start=0, step=1, limit=4
    $region2: #{lfm_resize_adaptive.3} parent=1 // loop_pre_header
      _
    $region3: #{lfm_resize_adaptive.3} parent=1 // loop_header
      %s14 = sphi 0, %s18
      %p15 = scmp.ge.s32.totalorder %s14, 4
      %s21 = sphi 0, %s33
      %s22 = sphi 0, %s29
      %s23 = sphi 0, %s21
      %s24 = sphi 0, %s22
      %s25 = sphi 0, %s23
      %s26 = sphi 0, %s24
      %s34 = sphi 0, %s34
      %s36 = sphi 0, %s34
      %s37 = sphi 0, %s36
      %s51 = sphi 0, %s37
      %s59 = sphi 0, %s61
      %s62 = sphi 0, %s59
      %s63 = sphi 0, %s62
      %s79 = sphi 0, %s63
      %s85 = sphi 0, %s87
      %s88 = sphi 0, %s85
      %s89 = sphi 0, %s88
      %s105 = sphi 0, %s89
      %s109 = sphi 0, %s109
      %s111 = sphi 0, %s109
      %s112 = sphi 0, %s111
      %s126 = sphi 0, %s112
      %s130 = sphi 0, %s130
      %s132 = sphi 0, %s130
      %s133 = sphi 0, %s132
      %s147 = sphi 0, %s133
      %s151 = sphi 0, %s151
      %s153 = sphi 0, %s151
      %s154 = sphi 0, %s153
      %s168 = sphi 0, %s154
      %s172 = sphi 0, %s172
      %s174 = sphi 0, %s172
      %s175 = sphi 0, %s174
      %s189 = sphi 0, %s175
      %s197 = sphi 0, %s199
      %s200 = sphi 0, %s197
      %s201 = sphi 0, %s200
      %s217 = sphi 0, %s201
    $region4: #{lfm_resize_adaptive.3} parent=1 // loop_header_branch
      %17 = sbr.rel (%p15) target = $region8
    $region5: #{lfm_resize_adaptive.3} parent=1 // loop_body
      %s19 = ssub.s32 %s14, 1
      %s20 = ssub.s32 %s14, 2
      %s27 = sadd.s32 1, %s22
      %p28 = scmp.ge.s32.totalorder %s27, 1
      %s29 = scalar_select %p28, 0, %s27
      %s30 = sadd.s32 1, %s21
      %s31 = scalar_select %p28, %s30, %s21
      %p32 = scmp.ge.s32.totalorder %s31, 2
      %s33 = scalar_select %p32, 0, %s31
      %s35 = sadd.s32 %s34, 1
      %p38 = scmp.eq.s32.totalorder %s14, 1
      %p39 = scmp.ne.s32.totalorder %s34, %s36
      %p40 = scmp.eq.s32.totalorder %s14, 0
      %p41 = por %p39, %p40
      %p42 = scmp.ne.s32.totalorder %s34, %s36
      %p43 = scmp.eq.s32.totalorder %s19, 1
      %p44 = por %p42, %p43
      %p45 = scmp.ne.s32.totalorder %s36, %s37
      %p46 = scmp.eq.s32.totalorder %s19, 0
      %p47 = por %p45, %p46
      %p48 = scmp.ne.s32.totalorder %s36, %s37
      %p49 = scmp.eq.s32.totalorder %s20, 1
      %p50 = por %p48, %p49
      %p52 = scmp.ne.s32.totalorder %s37, %s51
      %p53 = scmp.eq.s32.totalorder %s20, 0
      %p54 = por %p52, %p53
      %s55 = ssub.s32 %s21, %s33
      %s56 = ssub.s32 %s22, %s29
      %s57 = sor.u32 %s55, %s56
      %p58 = scmp.eq.s32.totalorder %s57, 0
      %s60 = sadd.s32 %s59, 1
      %s61 = scalar_select %p58, %s59, %s60
      %p64 = pneg %p58
      %p65 = scmp.eq.s32.totalorder %s14, 1
      %p66 = por %p64, %p65
      %p67 = scmp.ne.s32.totalorder %s59, %s62
      %p68 = scmp.eq.s32.totalorder %s14, 0
      %p69 = por %p67, %p68
      %p70 = scmp.ne.s32.totalorder %s59, %s62
      %p71 = scmp.eq.s32.totalorder %s19, 1
      %p72 = por %p70, %p71
      %p73 = scmp.ne.s32.totalorder %s62, %s63
      %p74 = scmp.eq.s32.totalorder %s19, 0
      %p75 = por %p73, %p74
      %p76 = scmp.ne.s32.totalorder %s62, %s63
      %p77 = scmp.eq.s32.totalorder %s20, 1
      %p78 = por %p76, %p77
      %p80 = scmp.ne.s32.totalorder %s63, %s79
      %p81 = scmp.eq.s32.totalorder %s20, 0
      %p82 = por %p80, %p81
      %s83 = ssub.s32 %s22, %s29
      %p84 = scmp.eq.s32.totalorder %s83, 0
      %s86 = sadd.s32 %s85, 1
      %s87 = scalar_select %p84, %s85, %s86
      %p90 = pneg %p84
      %p91 = scmp.eq.s32.totalorder %s14, 1
      %p92 = por %p90, %p91
      %p93 = scmp.ne.s32.totalorder %s85, %s88
      %p94 = scmp.eq.s32.totalorder %s14, 0
      %p95 = por %p93, %p94
      %p96 = scmp.ne.s32.totalorder %s85, %s88
      %p97 = scmp.eq.s32.totalorder %s19, 1
      %p98 = por %p96, %p97
      %p99 = scmp.ne.s32.totalorder %s88, %s89
      %p100 = scmp.eq.s32.totalorder %s19, 0
      %p101 = por %p99, %p100
      %p102 = scmp.ne.s32.totalorder %s88, %s89
      %p103 = scmp.eq.s32.totalorder %s20, 1
      %p104 = por %p102, %p103
      %p106 = scmp.ne.s32.totalorder %s89, %s105
      %p107 = scmp.eq.s32.totalorder %s20, 0
      %p108 = por %p106, %p107
      %s110 = sadd.s32 %s109, 1
      %p113 = scmp.eq.s32.totalorder %s14, 1
      %p114 = scmp.ne.s32.totalorder %s109, %s111
      %p115 = scmp.eq.s32.totalorder %s14, 0
      %p116 = por %p114, %p115
      %p117 = scmp.ne.s32.totalorder %s109, %s111
      %p118 = scmp.eq.s32.totalorder %s19, 1
      %p119 = por %p117, %p118
      %p120 = scmp.ne.s32.totalorder %s111, %s112
      %p121 = scmp.eq.s32.totalorder %s19, 0
      %p122 = por %p120, %p121
      %p123 = scmp.ne.s32.totalorder %s111, %s112
      %p124 = scmp.eq.s32.totalorder %s20, 1
      %p125 = por %p123, %p124
      %p127 = scmp.ne.s32.totalorder %s112, %s126
      %p128 = scmp.eq.s32.totalorder %s20, 0
      %p129 = por %p127, %p128
      %s131 = sadd.s32 %s130, 1
      %p134 = scmp.eq.s32.totalorder %s14, 1
      %p135 = scmp.ne.s32.totalorder %s130, %s132
      %p136 = scmp.eq.s32.totalorder %s14, 0
      %p137 = por %p135, %p136
      %p138 = scmp.ne.s32.totalorder %s130, %s132
      %p139 = scmp.eq.s32.totalorder %s19, 1
      %p140 = por %p138, %p139
      %p141 = scmp.ne.s32.totalorder %s132, %s133
      %p142 = scmp.eq.s32.totalorder %s19, 0
      %p143 = por %p141, %p142
      %p144 = scmp.ne.s32.totalorder %s132, %s133
      %p145 = scmp.eq.s32.totalorder %s20, 1
      %p146 = por %p144, %p145
      %p148 = scmp.ne.s32.totalorder %s133, %s147
      %p149 = scmp.eq.s32.totalorder %s20, 0
      %p150 = por %p148, %p149
      %s152 = sadd.s32 %s151, 1
      %p155 = scmp.eq.s32.totalorder %s14, 1
      %p156 = scmp.ne.s32.totalorder %s151, %s153
      %p157 = scmp.eq.s32.totalorder %s14, 0
      %p158 = por %p156, %p157
      %p159 = scmp.ne.s32.totalorder %s151, %s153
      %p160 = scmp.eq.s32.totalorder %s19, 1
      %p161 = por %p159, %p160
      %p162 = scmp.ne.s32.totalorder %s153, %s154
      %p163 = scmp.eq.s32.totalorder %s19, 0
      %p164 = por %p162, %p163
      %p165 = scmp.ne.s32.totalorder %s153, %s154
      %p166 = scmp.eq.s32.totalorder %s20, 1
      %p167 = por %p165, %p166
      %p169 = scmp.ne.s32.totalorder %s154, %s168
      %p170 = scmp.eq.s32.totalorder %s20, 0
      %p171 = por %p169, %p170
      %s173 = sadd.s32 %s172, 1
      %p176 = scmp.eq.s32.totalorder %s14, 1
      %p177 = scmp.ne.s32.totalorder %s172, %s174
      %p178 = scmp.eq.s32.totalorder %s14, 0
      %p179 = por %p177, %p178
      %p180 = scmp.ne.s32.totalorder %s172, %s174
      %p181 = scmp.eq.s32.totalorder %s19, 1
      %p182 = por %p180, %p181
      %p183 = scmp.ne.s32.totalorder %s174, %s175
      %p184 = scmp.eq.s32.totalorder %s19, 0
      %p185 = por %p183, %p184
      %p186 = scmp.ne.s32.totalorder %s174, %s175
      %p187 = scmp.eq.s32.totalorder %s20, 1
      %p188 = por %p186, %p187
      %p190 = scmp.ne.s32.totalorder %s175, %s189
      %p191 = scmp.eq.s32.totalorder %s20, 0
      %p192 = por %p190, %p191
      %s193 = ssub.s32 %s21, %s33
      %s194 = ssub.s32 %s22, %s29
      %s195 = sor.u32 %s193, %s194
      %p196 = scmp.eq.s32.totalorder %s195, 0
      %s198 = sadd.s32 %s197, 1
      %s199 = scalar_select %p196, %s197, %s198
      %p202 = pneg %p196
      %p203 = scmp.eq.s32.totalorder %s14, 1
      %p204 = por %p202, %p203
      %p205 = scmp.ne.s32.totalorder %s197, %s200
      %p206 = scmp.eq.s32.totalorder %s14, 0
      %p207 = por %p205, %p206
      %p208 = scmp.ne.s32.totalorder %s197, %s200
      %p209 = scmp.eq.s32.totalorder %s19, 1
      %p210 = por %p208, %p209
      %p211 = scmp.ne.s32.totalorder %s200, %s201
      %p212 = scmp.eq.s32.totalorder %s19, 0
      %p213 = por %p211, %p212
      %p214 = scmp.ne.s32.totalorder %s200, %s201
      %p215 = scmp.eq.s32.totalorder %s20, 1
      %p216 = por %p214, %p215
      %p218 = scmp.ne.s32.totalorder %s201, %s217
      %p219 = scmp.eq.s32.totalorder %s20, 0
      %p220 = por %p218, %p219
      %p221 = scmp.le.s32.totalorder 1, %s14
      %p222 = scmp.lt.s32.totalorder %s14, 3
      %p223 = pnand %p221, %p222
      %p224 = pneg %p223
      // Predicated region
      $region9: #{lfm_resize_adaptive.3} parent=5 // pred_check
        _
      $region10: #{lfm_resize_adaptive.3} parent=5 // pred_check_branch
        %226 = sbr.rel (%p223) target = $region12
      $region11: #{lfm_resize_adaptive.3} parent=5 // pred_region
        %s227 = ssub.s32 %s14, 1
        // Predicated region
        $region13: #{lfm_resize_adaptive.3} parent=11 // pred_check
          %p228 = pneg %p47
        $region14: #{lfm_resize_adaptive.3} parent=11 // pred_check_branch
          %230 = sbr.rel (%p228) target = $region16
        $region15: #{lfm_resize_adaptive.3} parent=11 // pred_region
          %232 = vsyncadd [#allocation3], 0
          %s234 = sshll.u32 %s0, 4
          %s235 = int_to_ptr.vmem [resolvable:$true] %s234
          %237 = dma.vmem_to_smem %s235, 16, [#allocation2], [#allocation3]
        $region16: #{lfm_resize_adaptive.3} parent=11 // pred_fallthru
          _
        // Predicated region
        $region17: #{lfm_resize_adaptive.3} parent=11 // pred_check
          %p238 = pneg %p101
        $region18: #{lfm_resize_adaptive.3} parent=11 // pred_check_branch
          %240 = sbr.rel (%p238) target = $region20
        $region19: #{lfm_resize_adaptive.3} parent=11 // pred_region
          %s241 = smul.u32 2, %s24
          %p242 = scmp.lt.s32.totalorder %s241, 1
          %s243 = scalar_select %p242, %s241, 1
          %s244 = scalar_lea.vmem %s2, %s243
          %s245 = smul.u32 2, %s24
        $region20: #{lfm_resize_adaptive.3} parent=11 // pred_fallthru
          _
        // Predicated region
        $region21: #{lfm_resize_adaptive.3} parent=11 // pred_check
          %p246 = pneg %p122
        $region22: #{lfm_resize_adaptive.3} parent=11 // pred_check_branch
          %248 = sbr.rel (%p246) target = $region24
        $region23: #{lfm_resize_adaptive.3} parent=11 // pred_region
          _
        $region24: #{lfm_resize_adaptive.3} parent=11 // pred_fallthru
          _
        // Predicated region
        $region25: #{lfm_resize_adaptive.3} parent=11 // pred_check
          %p249 = pneg %p143
        $region26: #{lfm_resize_adaptive.3} parent=11 // pred_check_branch
          %251 = sbr.rel (%p249) target = $region28
        $region27: #{lfm_resize_adaptive.3} parent=11 // pred_region
          _
        $region28: #{lfm_resize_adaptive.3} parent=11 // pred_fallthru
          _
        // Predicated region
        $region29: #{lfm_resize_adaptive.3} parent=11 // pred_check
          %p252 = pneg %p164
        $region30: #{lfm_resize_adaptive.3} parent=11 // pred_check_branch
          %254 = sbr.rel (%p252) target = $region32
        $region31: #{lfm_resize_adaptive.3} parent=11 // pred_region
          _
        $region32: #{lfm_resize_adaptive.3} parent=11 // pred_fallthru
          _
        // Predicated region
        $region33: #{lfm_resize_adaptive.3} parent=11 // pred_check
          %p255 = pneg %p185
        $region34: #{lfm_resize_adaptive.3} parent=11 // pred_check_branch
          %257 = sbr.rel (%p255) target = $region36
        $region35: #{lfm_resize_adaptive.3} parent=11 // pred_region
          _
        $region36: #{lfm_resize_adaptive.3} parent=11 // pred_fallthru
          _
      $region12: #{lfm_resize_adaptive.3} parent=5 // pred_fallthru
        _
      %p258 = scmp.lt.s32.totalorder %s14, 2
      // Predicated region
      $region37: #{lfm_resize_adaptive.3} parent=5 // pred_check
        %p259 = pneg %p258
      $region38: #{lfm_resize_adaptive.3} parent=5 // pred_check_branch
        %261 = sbr.rel (%p259) target = $region40
      $region39: #{lfm_resize_adaptive.3} parent=5 // pred_region
        // Predicated region
        $region41: #{lfm_resize_adaptive.3} parent=39 // pred_check
          %p262 = pneg %p69
        $region42: #{lfm_resize_adaptive.3} parent=39 // pred_check_branch
          %264 = sbr.rel (%p262) target = $region44
        $region43: #{lfm_resize_adaptive.3} parent=39 // pred_region
          %s265 = smul.u32 2, %s22
          %p266 = scmp.lt.s32.totalorder %s21, 1
          %s267 = scalar_select %p266, %s21, 1
          %p268 = scmp.lt.s32.totalorder %s265, 1
          %s269 = scalar_select %p268, %s265, 1
          %s270 = smul.addr %s267, 2
          %s271 = sadd.s32 %s269, %s270
          %s272 = smul.addr %s271, 8
          %s273 = scalar_lea.vmem %s1, %s272
          %s274 = smul.u32 2, %s22
        $region44: #{lfm_resize_adaptive.3} parent=39 // pred_fallthru
          _
      $region40: #{lfm_resize_adaptive.3} parent=5 // pred_fallthru
        _
      %p275 = scmp.le.s32.totalorder 1, %s14
      %p276 = scmp.lt.s32.totalorder %s14, 3
      %p277 = pnand %p275, %p276
      %p278 = pneg %p277
      // Predicated region
      $region45: #{lfm_resize_adaptive.3} parent=5 // pred_check
        _
      $region46: #{lfm_resize_adaptive.3} parent=5 // pred_check_branch
        %280 = sbr.rel (%p277) target = $region48
      $region47: #{lfm_resize_adaptive.3} parent=5 // pred_region
        %s281 = ssub.s32 %s14, 1
        // Predicated region
        $region49: #{lfm_resize_adaptive.3} parent=47 // pred_check
          %p282 = pneg %p47
        $region50: #{lfm_resize_adaptive.3} parent=47 // pred_check_branch
          %284 = sbr.rel (%p282) target = $region52
        $region51: #{lfm_resize_adaptive.3} parent=47 // pred_region
          %286 = dma.done [#allocation3], 16
        $region52: #{lfm_resize_adaptive.3} parent=47 // pred_fallthru
          _
        %287 = sfence
        %p288 = pneg %p47
        %p289 = pneg %p44
        %s290 = smul.u32 2, %s24
        %p291 = scmp.lt.s32.totalorder %s23, 1
        %s292 = scalar_select %p291, %s23, 1
        %p293 = scmp.lt.s32.totalorder %s290, 1
        %s294 = scalar_select %p293, %s290, 1
        %s295 = smul.addr %s292, 2
        %s296 = sadd.s32 %s294, %s295
        %s297 = smul.addr %s296, 8
        %s298 = scalar_lea.vmem %s1, %s297
        %p299 = pneg %p75
        %p300 = pneg %p72
        %s301 = smul.u32 2, %s24
        %p302 = scmp.lt.s32.totalorder %s301, 1
        %s303 = scalar_select %p302, %s301, 1
        %s304 = scalar_lea.vmem %s2, %s303
        %p305 = pneg %p101
        %p306 = pneg %p98
        %p307 = pneg %p122
        %p308 = pneg %p119
        %p309 = pneg %p143
        %p310 = pneg %p140
        %p311 = pneg %p164
        %p312 = pneg %p161
        %p313 = pneg %p185
        %p314 = pneg %p182
        %p315 = pneg %p213
        %p316 = pneg %p210
        %s317 = smul.u32 2, %s24
        %p318 = scmp.lt.s32.totalorder %s23, 1
        %s319 = scalar_select %p318, %s23, 1
        %p320 = scmp.lt.s32.totalorder %s317, 1
        %s321 = scalar_select %p320, %s317, 1
        %s322 = smul.addr %s319, 2
        %s323 = sadd.s32 %s321, %s322
        %s324 = smul.addr %s323, 8
        %s325 = scalar_lea.vmem %s7, %s324
        %s326 = smul.u32 2, %s24
        %p327 = scmp.lt.s32.totalorder %s23, 1
        %s328 = scalar_select %p327, %s23, 1
        %p329 = scmp.lt.s32.totalorder %s326, 1
        %s330 = scalar_select %p329, %s326, 1
        %s331 = smul.addr %s328, 2
        %s332 = sadd.s32 %s330, %s331
        %s333 = smul.addr %s332, 8
        %s334 = scalar_lea.vmem %s1, %s333
        %s335 = smul.u32 2, %s24
        %s336 = smul.u32 2, %s24
        %p337 = scmp.lt.s32.totalorder %s336, 1
        %s338 = scalar_select %p337, %s336, 1
        %s339 = scalar_lea.vmem %s2, %s338
        %s340 = smul.u32 2, %s24
        %s341 = smul.u32 2, %s24
        %p342 = scmp.lt.s32.totalorder %s23, 1
        %s343 = scalar_select %p342, %s23, 1
        %p344 = scmp.lt.s32.totalorder %s341, 1
        %s345 = scalar_select %p344, %s341, 1
        %s346 = smul.addr %s343, 2
        %s347 = sadd.s32 %s345, %s346
        %s348 = smul.addr %s347, 8
        %s349 = scalar_lea.vmem %s7, %s348
        %s350 = smul.u32 2, %s24
        %s351 = sld [smem:[#allocation2 + %s23]]
        %v352 = vld [vmem:[%s339] sm:$0x3]
        %v353 = vstv %s351
        %v354 = vmul.f32 %v353, %v352
        %v355 = vsub.f32 1.0, %v354
        %v356 = vld [vmem:[%s334] sm:$0xff]
        %v357 = vld [vmem:[%s334 + $0x8] sm:$0xff]
        %v359 = vperm.slane %v355, 0
        %v360 = vperm.slane %v355, 1
        %v363 = vmul.f32 %v356, %v359
        %v364 = vmul.f32 %v357, %v360
        %v365 = vld [vmem:[%s3] sm:$0xff]
        %v366 = vld [vmem:[%s4] sm:$0xff]
        %368 = vset.pattern.permute.xlu0 0
        %369 = vperm.xlu0 %368, %v366
        %v370 = vpop.permute.xlu0 %369
        %vm372 = vcmask 64512
        %v374 = vsel %vm372, %v365, 0
        %376 = vmatpush.msra.mxu0 0.0
        %377 = vmatpush.msra.mxu0 0.0
        %378 = vmatpush.msra.mxu0 0.0
        %379 = vmatpush.msra.mxu0 0.0
        %380 = vmatpush.msra.mxu0 0.0
        %381 = vmatpush.msra.mxu0 0.0
        %382 = vmatpush.msra.mxu0 0.0
        %383 = vmatpush.msra.mxu0 0.0
        %384 = vmatpush.msra.mxu0 0.0
        %385 = vmatpush.msra.mxu0 0.0
        %386 = vmatpush.msra.mxu0 0.0
        %387 = vmatpush.msra.mxu0 0.0
        %388 = vmatpush.msra.mxu0 0.0
        %389 = vmatpush.msra.mxu0 0.0
        %390 = vmatpush.msra.mxu0 0.0
        %391 = vmatpush.msra.mxu0 %v363
        %392 = vmatmul.f32.gmra.mxu0 %v374
        %v393 = vpop.f32.mrf.mxu0
        %v394 = vadd.f32 %v370, %v393
        %395 = vdwg.mxu0
        %396 = vmatpush.msra.mxu0 0.0
        %397 = vmatpush.msra.mxu0 0.0
        %398 = vmatpush.msra.mxu0 0.0
        %399 = vmatpush.msra.mxu0 0.0
        %400 = vmatpush.msra.mxu0 0.0
        %401 = vmatpush.msra.mxu0 0.0
        %402 = vmatpush.msra.mxu0 0.0
        %403 = vmatpush.msra.mxu0 0.0
        %404 = vmatpush.msra.mxu0 0.0
        %405 = vmatpush.msra.mxu0 0.0
        %406 = vmatpush.msra.mxu0 0.0
        %407 = vmatpush.msra.mxu0 0.0
        %408 = vmatpush.msra.mxu0 0.0
        %409 = vmatpush.msra.mxu0 0.0
        %410 = vmatpush.msra.mxu0 0.0
        %411 = vmatpush.msra.mxu0 %v364
        %412 = vmatmul.f32.gmra.mxu0 %v374
        %v413 = vpop.f32.mrf.mxu0
        %v414 = vadd.f32 %v370, %v413
        %415 = vdwg.mxu0
        %v416 = vmax.f32 %v394, 0.0
        %v417 = vmax.f32 %v414, 0.0
        %v418 = vld [vmem:[%s5] sm:$0xff]
        %v419 = vld [vmem:[%s6] sm:$0xff]
        %421 = vset.pattern.permute.xlu0 0
        %422 = vperm.xlu0 %421, %v419
        %v423 = vpop.permute.xlu0 %422
        %v426 = vsel %vm372, %v418, 0
        %428 = vmatpush.msra.mxu0 0.0
        %429 = vmatpush.msra.mxu0 0.0
        %430 = vmatpush.msra.mxu0 0.0
        %431 = vmatpush.msra.mxu0 0.0
        %432 = vmatpush.msra.mxu0 0.0
        %433 = vmatpush.msra.mxu0 0.0
        %434 = vmatpush.msra.mxu0 0.0
        %435 = vmatpush.msra.mxu0 0.0
        %436 = vmatpush.msra.mxu0 0.0
        %437 = vmatpush.msra.mxu0 0.0
        %438 = vmatpush.msra.mxu0 0.0
        %439 = vmatpush.msra.mxu0 0.0
        %440 = vmatpush.msra.mxu0 0.0
        %441 = vmatpush.msra.mxu0 0.0
        %442 = vmatpush.msra.mxu0 0.0
        %443 = vmatpush.msra.mxu0 %v416
        %444 = vmatmul.f32.gmra.mxu0 %v426
        %v445 = vpop.f32.mrf.mxu0
        %v446 = vadd.f32 %v423, %v445
        %447 = vdwg.mxu0
        %448 = vmatpush.msra.mxu0 0.0
        %449 = vmatpush.msra.mxu0 0.0
        %450 = vmatpush.msra.mxu0 0.0
        %451 = vmatpush.msra.mxu0 0.0
        %452 = vmatpush.msra.mxu0 0.0
        %453 = vmatpush.msra.mxu0 0.0
        %454 = vmatpush.msra.mxu0 0.0
        %455 = vmatpush.msra.mxu0 0.0
        %456 = vmatpush.msra.mxu0 0.0
        %457 = vmatpush.msra.mxu0 0.0
        %458 = vmatpush.msra.mxu0 0.0
        %459 = vmatpush.msra.mxu0 0.0
        %460 = vmatpush.msra.mxu0 0.0
        %461 = vmatpush.msra.mxu0 0.0
        %462 = vmatpush.msra.mxu0 0.0
        %463 = vmatpush.msra.mxu0 %v417
        %464 = vmatmul.f32.gmra.mxu0 %v426
        %v465 = vpop.f32.mrf.mxu0
        %v466 = vadd.f32 %v423, %v465
        %467 = vdwg.mxu0
        %468 = vst [vmem:[%s349] sm:$0xff] %v446
        %469 = vst [vmem:[%s349 + $0x8] sm:$0xff] %v466
        %s470 = smul.u32 2, %s24
        %p471 = scmp.lt.s32.totalorder %s23, 1
        %s472 = scalar_select %p471, %s23, 1
        %p473 = scmp.lt.s32.totalorder %s470, 1
        %s474 = scalar_select %p473, %s470, 1
        %s475 = smul.addr %s472, 2
        %s476 = sadd.s32 %s474, %s475
        %s477 = smul.addr %s476, 8
        %s478 = scalar_lea.vmem %s7, %s477
        // Predicated region
        $region53: #{lfm_resize_adaptive.3} parent=47 // pred_check
          %p479 = pneg %p210
        $region54: #{lfm_resize_adaptive.3} parent=47 // pred_check_branch
          %481 = sbr.rel (%p479) target = $region56
        $region55: #{lfm_resize_adaptive.3} parent=47 // pred_region
          %s482 = smul.u32 2, %s24
        $region56: #{lfm_resize_adaptive.3} parent=47 // pred_fallthru
          _
      $region48: #{lfm_resize_adaptive.3} parent=5 // pred_fallthru
        _
      %p483 = scmp.le.s32.totalorder 2, %s14
      // Predicated region
      $region57: #{lfm_resize_adaptive.3} parent=5 // pred_check
        %p484 = pneg %p483
      $region58: #{lfm_resize_adaptive.3} parent=5 // pred_check_branch
        %486 = sbr.rel (%p484) target = $region60
      $region59: #{lfm_resize_adaptive.3} parent=5 // pred_region
        %s487 = ssub.s32 %s14, 2
        // Predicated region
        $region61: #{lfm_resize_adaptive.3} parent=59 // pred_check
          %p488 = pneg %p216
        $region62: #{lfm_resize_adaptive.3} parent=59 // pred_check_branch
          %490 = sbr.rel (%p488) target = $region64
        $region63: #{lfm_resize_adaptive.3} parent=59 // pred_region
          %s491 = smul.u32 2, %s26
          %p492 = scmp.lt.s32.totalorder %s25, 1
          %s493 = scalar_select %p492, %s25, 1
          %p494 = scmp.lt.s32.totalorder %s491, 1
          %s495 = scalar_select %p494, %s491, 1
          %s496 = smul.addr %s493, 2
          %s497 = sadd.s32 %s495, %s496
          %s498 = smul.addr %s497, 8
          %s499 = scalar_lea.vmem %s7, %s498
        $region64: #{lfm_resize_adaptive.3} parent=59 // pred_fallthru
          _
      $region60: #{lfm_resize_adaptive.3} parent=5 // pred_fallthru
        _
    $region6: #{lfm_resize_adaptive.3} parent=1 // loop_footer
      %s18 = sadd.s32 1, %s14
    $region7: #{lfm_resize_adaptive.3} parent=1 // loop_footer_branch
      %13 = sbr.rel target = $region3
    $region8: #{lfm_resize_adaptive.3} parent=1 // loop_exit
      _
    %500 = vsyncpa [#allocation3], 1
    %s501 = scalar_lea.sflag [#allocation3], 1
    %502 = vsyncpa %s501, 1

// kernel: lfm_resize_adaptive.2
$region0: #{lfm_resize_adaptive.2}
  #allocation0 [shape = 'u32[]', space=smem, size = 0x4, offset = 0x4, fixed_abs, tag = 'smem constant byte address 0x4 - core index']
  #allocation1 [shape = 'u32[72,128]{1,0:T(1,128)}', space=vmem, size = 0x9000, scoped, tag = 'internal scratch']
  %s0 = inlined_call_operand.vmem [shape: f32[2,4,16,16], index: 0, kind: input, shape index: {}]
  %s1 = inlined_call_operand.vmem [shape: f32[9,4,4], index: 1, kind: input, shape index: {}]
  %s2 = inlined_call_operand.vmem [shape: f32[1,4], index: 2, kind: input, shape index: {}]
  %s3 = inlined_call_operand.vmem [shape: f32[4,4], index: 3, kind: input, shape index: {}]
  %s4 = inlined_call_operand.vmem [shape: f32[4,1], index: 4, kind: input, shape index: {}]
  %s5 = inlined_call_operand.vmem [shape: f32[2,1], index: 5, kind: output, shape index: {}]
  %s6 = sld [smem:[#allocation0]]
  $region30: #{lfm_resize_adaptive.2} parent=0
    _
  %s8 = ssub.s32 1, %s6
  %s9 = scalar_select 0, %s8, %s6
  // Predicated region
  $region2: #{lfm_resize_adaptive.2} parent=0 // pred_check
    _
  $region3: #{lfm_resize_adaptive.2} parent=0 // pred_check_branch
    %11 = sbr.rel (0) target = $region5
  $region4: #{lfm_resize_adaptive.2} parent=0 // pred_region
    _
  $region5: #{lfm_resize_adaptive.2} parent=0 // pred_fallthru
    _
  // Predicated region
  $region6: #{lfm_resize_adaptive.2} parent=0 // pred_check
    _
  $region7: #{lfm_resize_adaptive.2} parent=0 // pred_check_branch
    %13 = sbr.rel (0) target = $region9
  $region8: #{lfm_resize_adaptive.2} parent=0 // pred_region
    _
  $region9: #{lfm_resize_adaptive.2} parent=0 // pred_fallthru
    _
  // Predicated region
  $region10: #{lfm_resize_adaptive.2} parent=0 // pred_check
    _
  $region11: #{lfm_resize_adaptive.2} parent=0 // pred_check_branch
    %15 = sbr.rel (0) target = $region13
  $region12: #{lfm_resize_adaptive.2} parent=0 // pred_region
    _
  $region13: #{lfm_resize_adaptive.2} parent=0 // pred_fallthru
    _
  // Predicated region
  $region14: #{lfm_resize_adaptive.2} parent=0 // pred_check
    _
  $region15: #{lfm_resize_adaptive.2} parent=0 // pred_check_branch
    %17 = sbr.rel (0) target = $region17
  $region16: #{lfm_resize_adaptive.2} parent=0 // pred_region
    _
  $region17: #{lfm_resize_adaptive.2} parent=0 // pred_fallthru
    _
  // Predicated region
  $region18: #{lfm_resize_adaptive.2} parent=0 // pred_check
    _
  $region19: #{lfm_resize_adaptive.2} parent=0 // pred_check_branch
    %19 = sbr.rel (0) target = $region21
  $region20: #{lfm_resize_adaptive.2} parent=0 // pred_region
    _
  $region21: #{lfm_resize_adaptive.2} parent=0 // pred_fallthru
    _
  %v20 = vld [vmem:[%s0] sm:$0xff]
  %v21 = vld [vmem:[%s0 + $0x8] sm:$0xff]
  %v22 = vld [vmem:[%s0 + $0x10] sm:$0xff]
  %v23 = vld [vmem:[%s0 + $0x18] sm:$0xff]
  %v24 = vld [vmem:[%s0 + $0x20] sm:$0xff]
  %v25 = vld [vmem:[%s0 + $0x28] sm:$0xff]
  %v26 = vld [vmem:[%s0 + $0x30] sm:$0xff]
  %v27 = vld [vmem:[%s0 + $0x38] sm:$0xff]
  %v28 = vld [vmem:[%s0 + $0x40] sm:$0xff]
  %v29 = vld [vmem:[%s0 + $0x48] sm:$0xff]
  %v30 = vld [vmem:[%s0 + $0x50] sm:$0xff]
  %v31 = vld [vmem:[%s0 + $0x58] sm:$0xff]
  %v32 = vld [vmem:[%s0 + $0x60] sm:$0xff]
  %v33 = vld [vmem:[%s0 + $0x68] sm:$0xff]
  %v34 = vld [vmem:[%s0 + $0x70] sm:$0xff]
  %v35 = vld [vmem:[%s0 + $0x78] sm:$0xff]
  %vm36 = vcmask 113664
  %v37 = vsel %vm36, %v20, 0.0
  %38 = vadd.xlane.f32.xlu0 %v37
  %v39 = vpop.xlane.xlu0 %38
  %v40 = vsel %vm36, %v21, 0.0
  %41 = vadd.xlane.f32.xlu0 %v40
  %v42 = vpop.xlane.xlu0 %41
  %v43 = vsel %vm36, %v22, 0.0
  %44 = vadd.xlane.f32.xlu0 %v43
  %v45 = vpop.xlane.xlu0 %44
  %v46 = vsel %vm36, %v23, 0.0
  %47 = vadd.xlane.f32.xlu0 %v46
  %v48 = vpop.xlane.xlu0 %47
  %v49 = vsel %vm36, %v24, 0.0
  %50 = vadd.xlane.f32.xlu0 %v49
  %v51 = vpop.xlane.xlu0 %50
  %v52 = vsel %vm36, %v25, 0.0
  %53 = vadd.xlane.f32.xlu0 %v52
  %v54 = vpop.xlane.xlu0 %53
  %v55 = vsel %vm36, %v26, 0.0
  %56 = vadd.xlane.f32.xlu0 %v55
  %v57 = vpop.xlane.xlu0 %56
  %v58 = vsel %vm36, %v27, 0.0
  %59 = vadd.xlane.f32.xlu0 %v58
  %v60 = vpop.xlane.xlu0 %59
  %v61 = vsel %vm36, %v28, 0.0
  %62 = vadd.xlane.f32.xlu0 %v61
  %v63 = vpop.xlane.xlu0 %62
  %v64 = vsel %vm36, %v29, 0.0
  %65 = vadd.xlane.f32.xlu0 %v64
  %v66 = vpop.xlane.xlu0 %65
  %v67 = vsel %vm36, %v30, 0.0
  %68 = vadd.xlane.f32.xlu0 %v67
  %v69 = vpop.xlane.xlu0 %68
  %v70 = vsel %vm36, %v31, 0.0
  %71 = vadd.xlane.f32.xlu0 %v70
  %v72 = vpop.xlane.xlu0 %71
  %v73 = vsel %vm36, %v32, 0.0
  %74 = vadd.xlane.f32.xlu0 %v73
  %v75 = vpop.xlane.xlu0 %74
  %v76 = vsel %vm36, %v33, 0.0
  %77 = vadd.xlane.f32.xlu0 %v76
  %v78 = vpop.xlane.xlu0 %77
  %v79 = vsel %vm36, %v34, 0.0
  %80 = vadd.xlane.f32.xlu0 %v79
  %v81 = vpop.xlane.xlu0 %80
  %v82 = vsel %vm36, %v35, 0.0
  %83 = vadd.xlane.f32.xlu0 %v82
  %v84 = vpop.xlane.xlu0 %83
  %v101 = vlaneseq
  %v102 = vand.u32 %v101, 127
  %v103 = vperm.slane %v39, %v102
  %v104 = vadd.s32 %v102, 4294967288
  %v105 = vperm.slane %v42, %v104
  %vm106 = vcmask 130112
  %v107 = vsel %vm106, %v105, %v103
  %v108 = vperm.slane %v45, %v102
  %v109 = vperm.slane %v48, %v104
  %v110 = vsel %vm106, %v109, %v108
  %v111 = vperm.slane %v51, %v102
  %v112 = vperm.slane %v54, %v104
  %v113 = vsel %vm106, %v112, %v111
  %v114 = vperm.slane %v57, %v102
  %v115 = vperm.slane %v60, %v104
  %v116 = vsel %vm106, %v115, %v114
  %v117 = vperm.slane %v63, %v102
  %v118 = vperm.slane %v66, %v104
  %v119 = vsel %vm106, %v118, %v117
  %v120 = vperm.slane %v69, %v102
  %v121 = vperm.slane %v72, %v104
  %v122 = vsel %vm106, %v121, %v120
  %v123 = vperm.slane %v75, %v102
  %v124 = vperm.slane %v78, %v104
  %v125 = vsel %vm106, %v124, %v123
  %v126 = vperm.slane %v81, %v102
  %v127 = vperm.slane %v84, %v104
  %v128 = vsel %vm106, %v127, %v126
  %vm129 = vcmask 1041409
  %v130 = vsel %vm129, %v110, %v107
  %vm131 = vcmask 1042434
  %v132 = vsel %vm131, %v113, %v130
  %vm133 = vcmask 1043459
  %v134 = vsel %vm133, %v116, %v132
  %v135 = vsel %vm129, %v122, %v119
  %v136 = vsel %vm131, %v125, %v135
  %v137 = vsel %vm133, %v128, %v136
  %vm140 = vcmask 109568
  %v141 = vsel %vm140, %v134, 0.0
  %142 = vadd.xlane.f32.xlu0 %v141
  %v143 = vpop.xlane.xlu0 %142
  %v144 = vsel %vm140, %v137, 0.0
  %145 = vadd.xlane.f32.xlu0 %v144
  %v146 = vpop.xlane.xlu0 %145
  %v147 = vld [vmem:[%s1] sm:$0xf]
  %v148 = vadd.s32 %v102, 1
  %v149 = vperm.slane %v39, %v148
  %v150 = vadd.s32 %v102, 4294967289
  %v151 = vperm.slane %v42, %v150
  %vm152 = vcmask 121912
  %v153 = vsel %vm152, %v151, %v149
  %v154 = vperm.slane %v45, %v148
  %v155 = vperm.slane %v48, %v150
  %v156 = vsel %vm152, %v155, %v154
  %v157 = vperm.slane %v51, %v148
  %v158 = vperm.slane %v54, %v150
  %v159 = vsel %vm152, %v158, %v157
  %v160 = vperm.slane %v57, %v148
  %v161 = vperm.slane %v60, %v150
  %v162 = vsel %vm152, %v161, %v160
  %v163 = vperm.slane %v63, %v148
  %v164 = vperm.slane %v66, %v150
  %v165 = vsel %vm152, %v164, %v163
  %v166 = vperm.slane %v69, %v148
  %v167 = vperm.slane %v72, %v150
  %v168 = vsel %vm152, %v167, %v166
  %v169 = vperm.slane %v75, %v148
  %v170 = vperm.slane %v78, %v150
  %v171 = vsel %vm152, %v170, %v169
  %v172 = vperm.slane %v81, %v148
  %v173 = vperm.slane %v84, %v150
  %v174 = vsel %vm152, %v173, %v172
  %v175 = vsel %vm129, %v156, %v153
  %v176 = vsel %vm131, %v159, %v175
  %v177 = vsel %vm133, %v162, %v176
  %v178 = vsel %vm129, %v168, %v165
  %v179 = vsel %vm131, %v171, %v178
  %v180 = vsel %vm133, %v174, %v179
  %v183 = vsel %vm140, %v177, 0.0
  %184 = vadd.xlane.f32.xlu0 %v183
  %v185 = vpop.xlane.xlu0 %184
  %v186 = vsel %vm140, %v180, 0.0
  %187 = vadd.xlane.f32.xlu0 %v186
  %v188 = vpop.xlane.xlu0 %187
  %s189 = scalar_lea.vmem %s1, 12
  %v190 = vld [vmem:[%s189] sm:$0xf]
  %v193 = vperm.slane %v185, %v102
  %v194 = vperm.slane %v188, %v102
  %v195 = vsel %vm129, %v194, %v193
  %vm196 = vcmask 31744
  %v197 = vsel %vm196, %v195, 0
  %vm199 = vcmask 1043456
  %v201 = vsel %vm199, %v190, 0
  %203 = vmatpush.msra.mxu0 0.0
  %204 = vmatpush.msra.mxu0 0.0
  %205 = vmatpush.msra.mxu0 0.0
  %206 = vmatpush.msra.mxu0 0.0
  %207 = vmatpush.msra.mxu0 0.0
  %208 = vmatpush.msra.mxu0 0.0
  %209 = vmatpush.msra.mxu0 0.0
  %210 = vmatpush.msra.mxu0 0.0
  %211 = vmatpush.msra.mxu0 0.0
  %212 = vmatpush.msra.mxu0 0.0
  %213 = vmatpush.msra.mxu0 0.0
  %214 = vmatpush.msra.mxu0 0.0
  %215 = vmatpush.msra.mxu0 0.0
  %216 = vmatpush.msra.mxu0 0.0
  %217 = vmatpush.msra.mxu0 0.0
  %218 = vmatpush.msra.mxu0 %v201
  %219 = vmatmul.f32.gmra.mxu0 %v197
  %v220 = vpop.f32.mrf.mxu0
  %v221 = vadd.f32 0.0, %v220
  %222 = vdwg.mxu0
  %v225 = vperm.slane %v143, %v102
  %v226 = vperm.slane %v146, %v102
  %v227 = vsel %vm129, %v226, %v225
  %v228 = vsel %vm196, %v227, 0
  %v231 = vsel %vm199, %v147, 0
  %233 = vmatpush.msra.mxu0 0.0
  %234 = vmatpush.msra.mxu0 0.0
  %235 = vmatpush.msra.mxu0 0.0
  %236 = vmatpush.msra.mxu0 0.0
  %237 = vmatpush.msra.mxu0 0.0
  %238 = vmatpush.msra.mxu0 0.0
  %239 = vmatpush.msra.mxu0 0.0
  %240 = vmatpush.msra.mxu0 0.0
  %241 = vmatpush.msra.mxu0 0.0
  %242 = vmatpush.msra.mxu0 0.0
  %243 = vmatpush.msra.mxu0 0.0
  %244 = vmatpush.msra.mxu0 0.0
  %245 = vmatpush.msra.mxu0 0.0
  %246 = vmatpush.msra.mxu0 0.0
  %247 = vmatpush.msra.mxu0 0.0
  %248 = vmatpush.msra.mxu0 %v231
  %249 = vmatmul.f32.gmra.mxu0 %v228
  %v250 = vpop.f32.mrf.mxu0
  %v251 = vadd.f32 %v221, %v250
  %252 = vdwg.mxu0
  %v253 = vadd.s32 %v102, 2
  %v254 = vperm.slane %v39, %v253
  %v255 = vadd.s32 %v102, 4294967290
  %v256 = vperm.slane %v42, %v255
  %vm257 = vcmask 113712
  %v258 = vsel %vm257, %v256, %v254
  %v259 = vperm.slane %v45, %v253
  %v260 = vperm.slane %v48, %v255
  %v261 = vsel %vm257, %v260, %v259
  %v262 = vperm.slane %v51, %v253
  %v263 = vperm.slane %v54, %v255
  %v264 = vsel %vm257, %v263, %v262
  %v265 = vperm.slane %v57, %v253
  %v266 = vperm.slane %v60, %v255
  %v267 = vsel %vm257, %v266, %v265
  %v268 = vperm.slane %v63, %v253
  %v269 = vperm.slane %v66, %v255
  %v270 = vsel %vm257, %v269, %v268
  %v271 = vperm.slane %v69, %v253
  %v272 = vperm.slane %v72, %v255
  %v273 = vsel %vm257, %v272, %v271
  %v274 = vperm.slane %v75, %v253
  %v275 = vperm.slane %v78, %v255
  %v276 = vsel %vm257, %v275, %v274
  %v277 = vperm.slane %v81, %v253
  %v278 = vperm.slane %v84, %v255
  %v279 = vsel %vm257, %v278, %v277
  %v280 = vsel %vm129, %v261, %v258
  %v281 = vsel %vm131, %v264, %v280
  %v282 = vsel %vm133, %v267, %v281
  %v283 = vsel %vm129, %v273, %v270
  %v284 = vsel %vm131, %v276, %v283
  %v285 = vsel %vm133, %v279, %v284
  %v288 = vsel %vm140, %v282, 0.0
  %289 = vadd.xlane.f32.xlu0 %v288
  %v290 = vpop.xlane.xlu0 %289
  %v291 = vsel %vm140, %v285, 0.0
  %292 = vadd.xlane.f32.xlu0 %v291
  %v293 = vpop.xlane.xlu0 %292
  %s294 = scalar_lea.vmem %s1, 24
  %v295 = vld [vmem:[%s294] sm:$0xf]
  %v298 = vperm.slane %v290, %v102
  %v299 = vperm.slane %v293, %v102
  %v300 = vsel %vm129, %v299, %v298
  %v301 = vsel %vm196, %v300, 0
  %v304 = vsel %vm199, %v295, 0
  %306 = vmatpush.msra.mxu0 0.0
  %307 = vmatpush.msra.mxu0 0.0
  %308 = vmatpush.msra.mxu0 0.0
  %309 = vmatpush.msra.mxu0 0.0
  %310 = vmatpush.msra.mxu0 0.0
  %311 = vmatpush.msra.mxu0 0.0
  %312 = vmatpush.msra.mxu0 0.0
  %313 = vmatpush.msra.mxu0 0.0
  %314 = vmatpush.msra.mxu0 0.0
  %315 = vmatpush.msra.mxu0 0.0
  %316 = vmatpush.msra.mxu0 0.0
  %317 = vmatpush.msra.mxu0 0.0
  %318 = vmatpush.msra.mxu0 0.0
  %319 = vmatpush.msra.mxu0 0.0
  %320 = vmatpush.msra.mxu0 0.0
  %321 = vmatpush.msra.mxu0 %v304
  %322 = vmatmul.f32.gmra.mxu0 %v301
  %v323 = vpop.f32.mrf.mxu0
  %v324 = vadd.f32 0.0, %v323
  %325 = vdwg.mxu0
  %v326 = vadd.f32 %v251, %v324
  %343 = vrot.lane.b32.xlu0 %v20, 127
  %v344 = vpop.permute.xlu0 %343
  %345 = vrot.lane.b32.xlu0 %v21, 127
  %v346 = vpop.permute.xlu0 %345
  %347 = vrot.lane.b32.xlu0 %v22, 127
  %v348 = vpop.permute.xlu0 %347
  %349 = vrot.lane.b32.xlu0 %v23, 127
  %v350 = vpop.permute.xlu0 %349
  %351 = vrot.lane.b32.xlu0 %v24, 127
  %v352 = vpop.permute.xlu0 %351
  %353 = vrot.lane.b32.xlu0 %v25, 127
  %v354 = vpop.permute.xlu0 %353
  %355 = vrot.lane.b32.xlu0 %v26, 127
  %v356 = vpop.permute.xlu0 %355
  %357 = vrot.lane.b32.xlu0 %v27, 127
  %v358 = vpop.permute.xlu0 %357
  %359 = vrot.lane.b32.xlu0 %v28, 127
  %v360 = vpop.permute.xlu0 %359
  %361 = vrot.lane.b32.xlu0 %v29, 127
  %v362 = vpop.permute.xlu0 %361
  %363 = vrot.lane.b32.xlu0 %v30, 127
  %v364 = vpop.permute.xlu0 %363
  %365 = vrot.lane.b32.xlu0 %v31, 127
  %v366 = vpop.permute.xlu0 %365
  %367 = vrot.lane.b32.xlu0 %v32, 127
  %v368 = vpop.permute.xlu0 %367
  %369 = vrot.lane.b32.xlu0 %v33, 127
  %v370 = vpop.permute.xlu0 %369
  %371 = vrot.lane.b32.xlu0 %v34, 127
  %v372 = vpop.permute.xlu0 %371
  %373 = vrot.lane.b32.xlu0 %v35, 127
  %v374 = vpop.permute.xlu0 %373
  %v391 = vsel %vm36, %v344, 0.0
  %392 = vadd.xlane.f32.xlu0 %v391
  %v393 = vpop.xlane.xlu0 %392
  %v394 = vsel %vm36, %v346, 0.0
  %395 = vadd.xlane.f32.xlu0 %v394
  %v396 = vpop.xlane.xlu0 %395
  %v397 = vsel %vm36, %v348, 0.0
  %398 = vadd.xlane.f32.xlu0 %v397
  %v399 = vpop.xlane.xlu0 %398
  %v400 = vsel %vm36, %v350, 0.0
  %401 = vadd.xlane.f32.xlu0 %v400
  %v402 = vpop.xlane.xlu0 %401
  %v403 = vsel %vm36, %v352, 0.0
  %404 = vadd.xlane.f32.xlu0 %v403
  %v405 = vpop.xlane.xlu0 %404
  %v406 = vsel %vm36, %v354, 0.0
  %407 = vadd.xlane.f32.xlu0 %v406
  %v408 = vpop.xlane.xlu0 %407
  %v409 = vsel %vm36, %v356, 0.0
  %410 = vadd.xlane.f32.xlu0 %v409
  %v411 = vpop.xlane.xlu0 %410
  %v412 = vsel %vm36, %v358, 0.0
  %413 = vadd.xlane.f32.xlu0 %v412
  %v414 = vpop.xlane.xlu0 %413
  %v415 = vsel %vm36, %v360, 0.0
  %416 = vadd.xlane.f32.xlu0 %v415
  %v417 = vpop.xlane.xlu0 %416
  %v418 = vsel %vm36, %v362, 0.0
  %419 = vadd.xlane.f32.xlu0 %v418
  %v420 = vpop.xlane.xlu0 %419
  %v421 = vsel %vm36, %v364, 0.0
  %422 = vadd.xlane.f32.xlu0 %v421
  %v423 = vpop.xlane.xlu0 %422
  %v424 = vsel %vm36, %v366, 0.0
  %425 = vadd.xlane.f32.xlu0 %v424
  %v426 = vpop.xlane.xlu0 %425
  %v427 = vsel %vm36, %v368, 0.0
  %428 = vadd.xlane.f32.xlu0 %v427
  %v429 = vpop.xlane.xlu0 %428
  %v430 = vsel %vm36, %v370, 0.0
  %431 = vadd.xlane.f32.xlu0 %v430
  %v432 = vpop.xlane.xlu0 %431
  %v433 = vsel %vm36, %v372, 0.0
  %434 = vadd.xlane.f32.xlu0 %v433
  %v435 = vpop.xlane.xlu0 %434
  %v436 = vsel %vm36, %v374, 0.0
  %437 = vadd.xlane.f32.xlu0 %v436
  %v438 = vpop.xlane.xlu0 %437
  %v455 = vperm.slane %v393, %v102
  %v456 = vperm.slane %v396, %v104
  %v457 = vsel %vm106, %v456, %v455
  %v458 = vperm.slane %v399, %v102
  %v459 = vperm.slane %v402, %v104
  %v460 = vsel %vm106, %v459, %v458
  %v461 = vperm.slane %v405, %v102
  %v462 = vperm.slane %v408, %v104
  %v463 = vsel %vm106, %v462, %v461
  %v464 = vperm.slane %v411, %v102
  %v465 = vperm.slane %v414, %v104
  %v466 = vsel %vm106, %v465, %v464
  %v467 = vperm.slane %v417, %v102
  %v468 = vperm.slane %v420, %v104
  %v469 = vsel %vm106, %v468, %v467
  %v470 = vperm.slane %v423, %v102
  %v471 = vperm.slane %v426, %v104
  %v472 = vsel %vm106, %v471, %v470
  %v473 = vperm.slane %v429, %v102
  %v474 = vperm.slane %v432, %v104
  %v475 = vsel %vm106, %v474, %v473
  %v476 = vperm.slane %v435, %v102
  %v477 = vperm.slane %v438, %v104
  %v478 = vsel %vm106, %v477, %v476
  %v479 = vsel %vm129, %v460, %v457
  %v480 = vsel %vm131, %v463, %v479
  %v481 = vsel %vm133, %v466, %v480
  %v482 = vsel %vm129, %v472, %v469
  %v483 = vsel %vm131, %v475, %v482
  %v484 = vsel %vm133, %v478, %v483
  %v487 = vsel %vm140, %v481, 0.0
  %488 = vadd.xlane.f32.xlu0 %v487
  %v489 = vpop.xlane.xlu0 %488
  %v490 = vsel %vm140, %v484, 0.0
  %491 = vadd.xlane.f32.xlu0 %v490
  %v492 = vpop.xlane.xlu0 %491
  %s493 = scalar_lea.vmem %s1, 4
  %v494 = vld [vmem:[%s493] sm:$0xf]
  %v497 = vperm.slane %v489, %v102
  %v498 = vperm.slane %v492, %v102
  %v499 = vsel %vm129, %v498, %v497
  %v500 = vsel %vm196, %v499, 0
  %v503 = vsel %vm199, %v494, 0
  %505 = vmatpush.msra.mxu0 0.0
  %506 = vmatpush.msra.mxu0 0.0
  %507 = vmatpush.msra.mxu0 0.0
  %508 = vmatpush.msra.mxu0 0.0
  %509 = vmatpush.msra.mxu0 0.0
  %510 = vmatpush.msra.mxu0 0.0
  %511 = vmatpush.msra.mxu0 0.0
  %512 = vmatpush.msra.mxu0 0.0
  %513 = vmatpush.msra.mxu0 0.0
  %514 = vmatpush.msra.mxu0 0.0
  %515 = vmatpush.msra.mxu0 0.0
  %516 = vmatpush.msra.mxu0 0.0
  %517 = vmatpush.msra.mxu0 0.0
  %518 = vmatpush.msra.mxu0 0.0
  %519 = vmatpush.msra.mxu0 0.0
  %520 = vmatpush.msra.mxu0 %v503
  %521 = vmatmul.f32.gmra.mxu0 %v500
  %v522 = vpop.f32.mrf.mxu0
  %v523 = vadd.f32 0.0, %v522
  %524 = vdwg.mxu0
  %v525 = vadd.f32 %v326, %v523
  %v526 = vperm.slane %v393, %v148
  %v527 = vperm.slane %v396, %v150
  %v528 = vsel %vm152, %v527, %v526
  %v529 = vperm.slane %v399, %v148
  %v530 = vperm.slane %v402, %v150
  %v531 = vsel %vm152, %v530, %v529
  %v532 = vperm.slane %v405, %v148
  %v533 = vperm.slane %v408, %v150
  %v534 = vsel %vm152, %v533, %v532
  %v535 = vperm.slane %v411, %v148
  %v536 = vperm.slane %v414, %v150
  %v537 = vsel %vm152, %v536, %v535
  %v538 = vperm.slane %v417, %v148
  %v539 = vperm.slane %v420, %v150
  %v540 = vsel %vm152, %v539, %v538
  %v541 = vperm.slane %v423, %v148
  %v542 = vperm.slane %v426, %v150
  %v543 = vsel %vm152, %v542, %v541
  %v544 = vperm.slane %v429, %v148
  %v545 = vperm.slane %v432, %v150
  %v546 = vsel %vm152, %v545, %v544
  %v547 = vperm.slane %v435, %v148
  %v548 = vperm.slane %v438, %v150
  %v549 = vsel %vm152, %v548, %v547
  %v550 = vsel %vm129, %v531, %v528
  %v551 = vsel %vm131, %v534, %v550
  %v552 = vsel %vm133, %v537, %v551
  %v553 = vsel %vm129, %v543, %v540
  %v554 = vsel %vm131, %v546, %v553
  %v555 = vsel %vm133, %v549, %v554
  %v558 = vsel %vm140, %v552, 0.0
  %559 = vadd.xlane.f32.xlu0 %v558
  %v560 = vpop.xlane.xlu0 %559
  %v561 = vsel %vm140, %v555, 0.0
  %562 = vadd.xlane.f32.xlu0 %v561
  %v563 = vpop.xlane.xlu0 %562
  %s564 = scalar_lea.vmem %s1, 16
  %v565 = vld [vmem:[%s564] sm:$0xf]
  %v568 = vperm.slane %v560, %v102
  %v569 = vperm.slane %v563, %v102
  %v570 = vsel %vm129, %v569, %v568
  %v571 = vsel %vm196, %v570, 0
  %v574 = vsel %vm199, %v565, 0
  %576 = vmatpush.msra.mxu0 0.0
  %577 = vmatpush.msra.mxu0 0.0
  %578 = vmatpush.msra.mxu0 0.0
  %579 = vmatpush.msra.mxu0 0.0
  %580 = vmatpush.msra.mxu0 0.0
  %581 = vmatpush.msra.mxu0 0.0
  %582 = vmatpush.msra.mxu0 0.0
  %583 = vmatpush.msra.mxu0 0.0
  %584 = vmatpush.msra.mxu0 0.0
  %585 = vmatpush.msra.mxu0 0.0
  %586 = vmatpush.msra.mxu0 0.0
  %587 = vmatpush.msra.mxu0 0.0
  %588 = vmatpush.msra.mxu0 0.0
  %589 = vmatpush.msra.mxu0 0.0
  %590 = vmatpush.msra.mxu0 0.0
  %591 = vmatpush.msra.mxu0 %v574
  %592 = vmatmul.f32.gmra.mxu0 %v571
  %v593 = vpop.f32.mrf.mxu0
  %v594 = vadd.f32 0.0, %v593
  %595 = vdwg.mxu0
  %v596 = vadd.f32 %v525, %v594
  %v597 = vperm.slane %v393, %v253
  %v598 = vperm.slane %v396, %v255
  %v599 = vsel %vm257, %v598, %v597
  %v600 = vperm.slane %v399, %v253
  %v601 = vperm.slane %v402, %v255
  %v602 = vsel %vm257, %v601, %v600
  %v603 = vperm.slane %v405, %v253
  %v604 = vperm.slane %v408, %v255
  %v605 = vsel %vm257, %v604, %v603
  %v606 = vperm.slane %v411, %v253
  %v607 = vperm.slane %v414, %v255
  %v608 = vsel %vm257, %v607, %v606
  %v609 = vperm.slane %v417, %v253
  %v610 = vperm.slane %v420, %v255
  %v611 = vsel %vm257, %v610, %v609
  %v612 = vperm.slane %v423, %v253
  %v613 = vperm.slane %v426, %v255
  %v614 = vsel %vm257, %v613, %v612
  %v615 = vperm.slane %v429, %v253
  %v616 = vperm.slane %v432, %v255
  %v617 = vsel %vm257, %v616, %v615
  %v618 = vperm.slane %v435, %v253
  %v619 = vperm.slane %v438, %v255
  %v620 = vsel %vm257, %v619, %v618
  %v621 = vsel %vm129, %v602, %v599
  %v622 = vsel %vm131, %v605, %v621
  %v623 = vsel %vm133, %v608, %v622
  %v624 = vsel %vm129, %v614, %v611
  %v625 = vsel %vm131, %v617, %v624
  %v626 = vsel %vm133, %v620, %v625
  %v629 = vsel %vm140, %v623, 0.0
  %630 = vadd.xlane.f32.xlu0 %v629
  %v631 = vpop.xlane.xlu0 %630
  %v632 = vsel %vm140, %v626, 0.0
  %633 = vadd.xlane.f32.xlu0 %v632
  %v634 = vpop.xlane.xlu0 %633
  %s635 = scalar_lea.vmem %s1, 28
  %v636 = vld [vmem:[%s635] sm:$0xf]
  %v639 = vperm.slane %v631, %v102
  %v640 = vperm.slane %v634, %v102
  %v641 = vsel %vm129, %v640, %v639
  %v642 = vsel %vm196, %v641, 0
  %v645 = vsel %vm199, %v636, 0
  %647 = vmatpush.msra.mxu0 0.0
  %648 = vmatpush.msra.mxu0 0.0
  %649 = vmatpush.msra.mxu0 0.0
  %650 = vmatpush.msra.mxu0 0.0
  %651 = vmatpush.msra.mxu0 0.0
  %652 = vmatpush.msra.mxu0 0.0
  %653 = vmatpush.msra.mxu0 0.0
  %654 = vmatpush.msra.mxu0 0.0
  %655 = vmatpush.msra.mxu0 0.0
  %656 = vmatpush.msra.mxu0 0.0
  %657 = vmatpush.msra.mxu0 0.0
  %658 = vmatpush.msra.mxu0 0.0
  %659 = vmatpush.msra.mxu0 0.0
  %660 = vmatpush.msra.mxu0 0.0
  %661 = vmatpush.msra.mxu0 0.0
  %662 = vmatpush.msra.mxu0 %v645
  %663 = vmatmul.f32.gmra.mxu0 %v642
  %v664 = vpop.f32.mrf.mxu0
  %v665 = vadd.f32 0.0, %v664
  %666 = vdwg.mxu0
  %v667 = vadd.f32 %v596, %v665
  %668 = vrot.lane.b32.xlu0 %v20, 126
  %v669 = vpop.permute.xlu0 %668
  %670 = vrot.lane.b32.xlu0 %v21, 126
  %v671 = vpop.permute.xlu0 %670
  %672 = vrot.lane.b32.xlu0 %v22, 126
  %v673 = vpop.permute.xlu0 %672
  %674 = vrot.lane.b32.xlu0 %v23, 126
  %v675 = vpop.permute.xlu0 %674
  %676 = vrot.lane.b32.xlu0 %v24, 126
  %v677 = vpop.permute.xlu0 %676
  %678 = vrot.lane.b32.xlu0 %v25, 126
  %v679 = vpop.permute.xlu0 %678
  %680 = vrot.lane.b32.xlu0 %v26, 126
  %v681 = vpop.permute.xlu0 %680
  %682 = vrot.lane.b32.xlu0 %v27, 126
  %v683 = vpop.permute.xlu0 %682
  %684 = vrot.lane.b32.xlu0 %v28, 126
  %v685 = vpop.permute.xlu0 %684
  %686 = vrot.lane.b32.xlu0 %v29, 126
  %v687 = vpop.permute.xlu0 %686
  %688 = vrot.lane.b32.xlu0 %v30, 126
  %v689 = vpop.permute.xlu0 %688
  %690 = vrot.lane.b32.xlu0 %v31, 126
  %v691 = vpop.permute.xlu0 %690
  %692 = vrot.lane.b32.xlu0 %v32, 126
  %v693 = vpop.permute.xlu0 %692
  %694 = vrot.lane.b32.xlu0 %v33, 126
  %v695 = vpop.permute.xlu0 %694
  %696 = vrot.lane.b32.xlu0 %v34, 126
  %v697 = vpop.permute.xlu0 %696
  %698 = vrot.lane.b32.xlu0 %v35, 126
  %v699 = vpop.permute.xlu0 %698
  %v716 = vsel %vm36, %v669, 0.0
  %717 = vadd.xlane.f32.xlu0 %v716
  %v718 = vpop.xlane.xlu0 %717
  %v719 = vsel %vm36, %v671, 0.0
  %720 = vadd.xlane.f32.xlu0 %v719
  %v721 = vpop.xlane.xlu0 %720
  %v722 = vsel %vm36, %v673, 0.0
  %723 = vadd.xlane.f32.xlu0 %v722
  %v724 = vpop.xlane.xlu0 %723
  %v725 = vsel %vm36, %v675, 0.0
  %726 = vadd.xlane.f32.xlu0 %v725
  %v727 = vpop.xlane.xlu0 %726
  %v728 = vsel %vm36, %v677, 0.0
  %729 = vadd.xlane.f32.xlu0 %v728
  %v730 = vpop.xlane.xlu0 %729
  %v731 = vsel %vm36, %v679, 0.0
  %732 = vadd.xlane.f32.xlu0 %v731
  %v733 = vpop.xlane.xlu0 %732
  %v734 = vsel %vm36, %v681, 0.0
  %735 = vadd.xlane.f32.xlu0 %v734
  %v736 = vpop.xlane.xlu0 %735
  %v737 = vsel %vm36, %v683, 0.0
  %738 = vadd.xlane.f32.xlu0 %v737
  %v739 = vpop.xlane.xlu0 %738
  %v740 = vsel %vm36, %v685, 0.0
  %741 = vadd.xlane.f32.xlu0 %v740
  %v742 = vpop.xlane.xlu0 %741
  %v743 = vsel %vm36, %v687, 0.0
  %744 = vadd.xlane.f32.xlu0 %v743
  %v745 = vpop.xlane.xlu0 %744
  %v746 = vsel %vm36, %v689, 0.0
  %747 = vadd.xlane.f32.xlu0 %v746
  %v748 = vpop.xlane.xlu0 %747
  %v749 = vsel %vm36, %v691, 0.0
  %750 = vadd.xlane.f32.xlu0 %v749
  %v751 = vpop.xlane.xlu0 %750
  %v752 = vsel %vm36, %v693, 0.0
  %753 = vadd.xlane.f32.xlu0 %v752
  %v754 = vpop.xlane.xlu0 %753
  %v755 = vsel %vm36, %v695, 0.0
  %756 = vadd.xlane.f32.xlu0 %v755
  %v757 = vpop.xlane.xlu0 %756
  %v758 = vsel %vm36, %v697, 0.0
  %759 = vadd.xlane.f32.xlu0 %v758
  %v760 = vpop.xlane.xlu0 %759
  %v761 = vsel %vm36, %v699, 0.0
  %762 = vadd.xlane.f32.xlu0 %v761
  %v763 = vpop.xlane.xlu0 %762
  %v780 = vperm.slane %v718, %v102
  %v781 = vperm.slane %v721, %v104
  %v782 = vsel %vm106, %v781, %v780
  %v783 = vperm.slane %v724, %v102
  %v784 = vperm.slane %v727, %v104
  %v785 = vsel %vm106, %v784, %v783
  %v786 = vperm.slane %v730, %v102
  %v787 = vperm.slane %v733, %v104
  %v788 = vsel %vm106, %v787, %v786
  %v789 = vperm.slane %v736, %v102
  %v790 = vperm.slane %v739, %v104
  %v791 = vsel %vm106, %v790, %v789
  %v792 = vperm.slane %v742, %v102
  %v793 = vperm.slane %v745, %v104
  %v794 = vsel %vm106, %v793, %v792
  %v795 = vperm.slane %v748, %v102
  %v796 = vperm.slane %v751, %v104
  %v797 = vsel %vm106, %v796, %v795
  %v798 = vperm.slane %v754, %v102
  %v799 = vperm.slane %v757, %v104
  %v800 = vsel %vm106, %v799, %v798
  %v801 = vperm.slane %v760, %v102
  %v802 = vperm.slane %v763, %v104
  %v803 = vsel %vm106, %v802, %v801
  %v804 = vsel %vm129, %v785, %v782
  %v805 = vsel %vm131, %v788, %v804
  %v806 = vsel %vm133, %v791, %v805
  %v807 = vsel %vm129, %v797, %v794
  %v808 = vsel %vm131, %v800, %v807
  %v809 = vsel %vm133, %v803, %v808
  %v812 = vsel %vm140, %v806, 0.0
  %813 = vadd.xlane.f32.xlu0 %v812
  %v814 = vpop.xlane.xlu0 %813
  %v815 = vsel %vm140, %v809, 0.0
  %816 = vadd.xlane.f32.xlu0 %v815
  %v817 = vpop.xlane.xlu0 %816
  %s818 = scalar_lea.vmem %s1, 8
  %v819 = vld [vmem:[%s818] sm:$0xf]
  %v822 = vperm.slane %v814, %v102
  %v823 = vperm.slane %v817, %v102
  %v824 = vsel %vm129, %v823, %v822
  %v825 = vsel %vm196, %v824, 0
  %v828 = vsel %vm199, %v819, 0
  %830 = vmatpush.msra.mxu0 0.0
  %831 = vmatpush.msra.mxu0 0.0
  %832 = vmatpush.msra.mxu0 0.0
  %833 = vmatpush.msra.mxu0 0.0
  %834 = vmatpush.msra.mxu0 0.0
  %835 = vmatpush.msra.mxu0 0.0
  %836 = vmatpush.msra.mxu0 0.0
  %837 = vmatpush.msra.mxu0 0.0
  %838 = vmatpush.msra.mxu0 0.0
  %839 = vmatpush.msra.mxu0 0.0
  %840 = vmatpush.msra.mxu0 0.0
  %841 = vmatpush.msra.mxu0 0.0
  %842 = vmatpush.msra.mxu0 0.0
  %843 = vmatpush.msra.mxu0 0.0
  %844 = vmatpush.msra.mxu0 0.0
  %845 = vmatpush.msra.mxu0 %v828
  %846 = vmatmul.f32.gmra.mxu0 %v825
  %v847 = vpop.f32.mrf.mxu0
  %v848 = vadd.f32 0.0, %v847
  %849 = vdwg.mxu0
  %v850 = vadd.f32 %v667, %v848
  %v851 = vperm.slane %v718, %v148
  %v852 = vperm.slane %v721, %v150
  %v853 = vsel %vm152, %v852, %v851
  %v854 = vperm.slane %v724, %v148
  %v855 = vperm.slane %v727, %v150
  %v856 = vsel %vm152, %v855, %v854
  %v857 = vperm.slane %v730, %v148
  %v858 = vperm.slane %v733, %v150
  %v859 = vsel %vm152, %v858, %v857
  %v860 = vperm.slane %v736, %v148
  %v861 = vperm.slane %v739, %v150
  %v862 = vsel %vm152, %v861, %v860
  %v863 = vperm.slane %v742, %v148
  %v864 = vperm.slane %v745, %v150
  %v865 = vsel %vm152, %v864, %v863
  %v866 = vperm.slane %v748, %v148
  %v867 = vperm.slane %v751, %v150
  %v868 = vsel %vm152, %v867, %v866
  %v869 = vperm.slane %v754, %v148
  %v870 = vperm.slane %v757, %v150
  %v871 = vsel %vm152, %v870, %v869
  %v872 = vperm.slane %v760, %v148
  %v873 = vperm.slane %v763, %v150
  %v874 = vsel %vm152, %v873, %v872
  %v875 = vsel %vm129, %v856, %v853
  %v876 = vsel %vm131, %v859, %v875
  %v877 = vsel %vm133, %v862, %v876
  %v878 = vsel %vm129, %v868, %v865
  %v879 = vsel %vm131, %v871, %v878
  %v880 = vsel %vm133, %v874, %v879
  %v883 = vsel %vm140, %v877, 0.0
  %884 = vadd.xlane.f32.xlu0 %v883
  %v885 = vpop.xlane.xlu0 %884
  %v886 = vsel %vm140, %v880, 0.0
  %887 = vadd.xlane.f32.xlu0 %v886
  %v888 = vpop.xlane.xlu0 %887
  %s889 = scalar_lea.vmem %s1, 20
  %v890 = vld [vmem:[%s889] sm:$0xf]
  %v893 = vperm.slane %v885, %v102
  %v894 = vperm.slane %v888, %v102
  %v895 = vsel %vm129, %v894, %v893
  %v896 = vsel %vm196, %v895, 0
  %v899 = vsel %vm199, %v890, 0
  %901 = vmatpush.msra.mxu0 0.0
  %902 = vmatpush.msra.mxu0 0.0
  %903 = vmatpush.msra.mxu0 0.0
  %904 = vmatpush.msra.mxu0 0.0
  %905 = vmatpush.msra.mxu0 0.0
  %906 = vmatpush.msra.mxu0 0.0
  %907 = vmatpush.msra.mxu0 0.0
  %908 = vmatpush.msra.mxu0 0.0
  %909 = vmatpush.msra.mxu0 0.0
  %910 = vmatpush.msra.mxu0 0.0
  %911 = vmatpush.msra.mxu0 0.0
  %912 = vmatpush.msra.mxu0 0.0
  %913 = vmatpush.msra.mxu0 0.0
  %914 = vmatpush.msra.mxu0 0.0
  %915 = vmatpush.msra.mxu0 0.0
  %916 = vmatpush.msra.mxu0 %v899
  %917 = vmatmul.f32.gmra.mxu0 %v896
  %v918 = vpop.f32.mrf.mxu0
  %v919 = vadd.f32 0.0, %v918
  %920 = vdwg.mxu0
  %v921 = vadd.f32 %v850, %v919
  %v922 = vperm.slane %v718, %v253
  %v923 = vperm.slane %v721, %v255
  %v924 = vsel %vm257, %v923, %v922
  %v925 = vperm.slane %v724, %v253
  %v926 = vperm.slane %v727, %v255
  %v927 = vsel %vm257, %v926, %v925
  %v928 = vperm.slane %v730, %v253
  %v929 = vperm.slane %v733, %v255
  %v930 = vsel %vm257, %v929, %v928
  %v931 = vperm.slane %v736, %v253
  %v932 = vperm.slane %v739, %v255
  %v933 = vsel %vm257, %v932, %v931
  %v934 = vperm.slane %v742, %v253
  %v935 = vperm.slane %v745, %v255
  %v936 = vsel %vm257, %v935, %v934
  %v937 = vperm.slane %v748, %v253
  %v938 = vperm.slane %v751, %v255
  %v939 = vsel %vm257, %v938, %v937
  %v940 = vperm.slane %v754, %v253
  %v941 = vperm.slane %v757, %v255
  %v942 = vsel %vm257, %v941, %v940
  %v943 = vperm.slane %v760, %v253
  %v944 = vperm.slane %v763, %v255
  %v945 = vsel %vm257, %v944, %v943
  %v946 = vsel %vm129, %v927, %v924
  %v947 = vsel %vm131, %v930, %v946
  %v948 = vsel %vm133, %v933, %v947
  %v949 = vsel %vm129, %v939, %v936
  %v950 = vsel %vm131, %v942, %v949
  %v951 = vsel %vm133, %v945, %v950
  %v954 = vsel %vm140, %v948, 0.0
  %955 = vadd.xlane.f32.xlu0 %v954
  %v956 = vpop.xlane.xlu0 %955
  %v957 = vsel %vm140, %v951, 0.0
  %958 = vadd.xlane.f32.xlu0 %v957
  %v959 = vpop.xlane.xlu0 %958
  %s960 = scalar_lea.vmem %s1, 32
  %v961 = vld [vmem:[%s960] sm:$0xf]
  %v964 = vperm.slane %v956, %v102
  %v965 = vperm.slane %v959, %v102
  %v966 = vsel %vm129, %v965, %v964
  %v967 = vsel %vm196, %v966, 0
  %v970 = vsel %vm199, %v961, 0
  %972 = vmatpush.msra.mxu0 0.0
  %973 = vmatpush.msra.mxu0 0.0
  %974 = vmatpush.msra.mxu0 0.0
  %975 = vmatpush.msra.mxu0 0.0
  %976 = vmatpush.msra.mxu0 0.0
  %977 = vmatpush.msra.mxu0 0.0
  %978 = vmatpush.msra.mxu0 0.0
  %979 = vmatpush.msra.mxu0 0.0
  %980 = vmatpush.msra.mxu0 0.0
  %981 = vmatpush.msra.mxu0 0.0
  %982 = vmatpush.msra.mxu0 0.0
  %983 = vmatpush.msra.mxu0 0.0
  %984 = vmatpush.msra.mxu0 0.0
  %985 = vmatpush.msra.mxu0 0.0
  %986 = vmatpush.msra.mxu0 0.0
  %987 = vmatpush.msra.mxu0 %v970
  %988 = vmatmul.f32.gmra.mxu0 %v967
  %v989 = vpop.f32.mrf.mxu0
  %v990 = vadd.f32 0.0, %v989
  %991 = vdwg.mxu0
  %v992 = vadd.f32 %v921, %v990
  %v993 = vmul.f32 %v992, 0.0051020407
  %v994 = vld [vmem:[%s2] sm:$0x1]
  %v996 = vperm.slane %v994, 0
  %v998 = vadd.f32 %v993, %v996
  %v999 = vld [vmem:[%s3] sm:$0xf]
  %v1001 = vsel %vm196, %v998, 0
  %v1004 = vsel %vm199, %v999, 0
  %1006 = vmatpush.msra.mxu0 0.0
  %1007 = vmatpush.msra.mxu0 0.0
  %1008 = vmatpush.msra.mxu0 0.0
  %1009 = vmatpush.msra.mxu0 0.0
  %1010 = vmatpush.msra.mxu0 0.0
  %1011 = vmatpush.msra.mxu0 0.0
  %1012 = vmatpush.msra.mxu0 0.0
  %1013 = vmatpush.msra.mxu0 0.0
  %1014 = vmatpush.msra.mxu0 0.0
  %1015 = vmatpush.msra.mxu0 0.0
  %1016 = vmatpush.msra.mxu0 0.0
  %1017 = vmatpush.msra.mxu0 0.0
  %1018 = vmatpush.msra.mxu0 0.0
  %1019 = vmatpush.msra.mxu0 0.0
  %1020 = vmatpush.msra.mxu0 0.0
  %1021 = vmatpush.msra.mxu0 %v1004
  %1022 = vmatmul.f32.gmra.mxu0 %v1001
  %v1023 = vpop.f32.mrf.mxu0
  %v1024 = vadd.f32 0.0, %v1023
  %1025 = vdwg.mxu0
  %v1026 = vmax.f32 %v1024, 0.0
  %v1027 = vld [vmem:[%s4] sm:$0xf]
  %v1029 = vsel %vm196, %v1026, 0
  %v1032 = vsel %vm199, %v1027, 0
  %1034 = vmatpush.msra.mxu0 0.0
  %1035 = vmatpush.msra.mxu0 0.0
  %1036 = vmatpush.msra.mxu0 0.0
  %1037 = vmatpush.msra.mxu0 0.0
  %1038 = vmatpush.msra.mxu0 0.0
  %1039 = vmatpush.msra.mxu0 0.0
  %1040 = vmatpush.msra.mxu0 0.0
  %1041 = vmatpush.msra.mxu0 0.0
  %1042 = vmatpush.msra.mxu0 0.0
  %1043 = vmatpush.msra.mxu0 0.0
  %1044 = vmatpush.msra.mxu0 0.0
  %1045 = vmatpush.msra.mxu0 0.0
  %1046 = vmatpush.msra.mxu0 0.0
  %1047 = vmatpush.msra.mxu0 0.0
  %1048 = vmatpush.msra.mxu0 0.0
  %1049 = vmatpush.msra.mxu0 %v1032
  %1050 = vmatmul.f32.gmra.mxu0 %v1029
  %v1051 = vpop.f32.mrf.mxu0
  %v1052 = vadd.f32 0.0, %v1051
  %1053 = vdwg.mxu0
  %v1054 = vsub.f32 0.0, %v1052
  %v1055 = vmul.f32 %v1054, 1.442695
  %v1056 = vpow.pop %v1055
  %v1057 = vadd.f32 %v1056, 1.0
  %v1058 = vrcp.pop %v1057
  %v1059 = vmul.f32 %v1057, %v1058
  %v1060 = vsub.f32 1.0, %v1059
  %v1061 = vmul.f32 %v1058, %v1060
  %v1062 = vadd.f32 %v1058, %v1061
  %vm1063 = vweird.f32 %v1057
  %vm1064 = vweird.f32 %v1058
  %vm1065 = vmor %vm1063, %vm1064
  %v1066 = vsel %vm1065, %v1058, %v1062
  %v1067 = vand.u32 2147483647, %v1057
  %vm1068 = vcmp.eq.f32.partialorder %v1067, 8.507059e+37
  %v1069 = vand.u32 %v1057, 2147483648
  %v1070 = vor.u32 1.1754944e-38, %v1069
  %v1071 = vsel %vm1068, %v1070, %v1066
  %v1072 = vmul.f32 1.0, %v1071
  %vm1073 = vcmask 1024
  %1074 = vst.msk [vmem:[%s5] sm:$0x3] %vm1073, %v1072
  // Predicated region
  $region22: #{lfm_resize_adaptive.2} parent=0 // pred_check
    _
  $region23: #{lfm_resize_adaptive.2} parent=0 // pred_check_branch
    %1076 = sbr.rel (0) target = $region25
  $region24: #{lfm_resize_adaptive.2} parent=0 // pred_region
    _
  $region25: #{lfm_resize_adaptive.2} parent=0 // pred_fallthru
    _
  // Predicated region
  $region26: #{lfm_resize_adaptive.2} parent=0 // pred_check
    _
  $region27: #{lfm_resize_adaptive.2} parent=0 // pred_check_branch
    %1078 = sbr.rel (0) target = $region29
  $region28: #{lfm_resize_adaptive.2} parent=0 // pred_region
    _
  $region29: #{lfm_resize_adaptive.2} parent=0 // pred_fallthru
    _

</llo_original>
